<compile_context>
chip_gen: v6e
topology: v6e:2x2x1
jax: 0.10.0
libtpu: 0.0.40
codegen_flags: <defaults>
</compile_context>

<pallas_src>
import functools
import math

import jax
import jax.numpy as jnp
from jax import lax
from jax.experimental import pallas as pl
from jax.experimental.pallas import tpu as pltpu


def _round_up(n, m):
    return ((n + m - 1) // m) * m


def _cdiv(a, b):
    return -(-a // b)


def _vmem_capacity_bytes():
    """Physical VMEM per TensorCore; conservative 64 MiB (v7x) fallback."""
    try:
        return int(pltpu.get_tpu_info().vmem_capacity_bytes)
    except Exception:
        return 64 * 1024 * 1024


def rnn_kernel(x_ref, wxh_ref, whh_ref, bh_ref, who_ref, bo_ref, out_ref,
               h_ref, xw_ref, *, seq_len, t_chunk, unroll):
    """One chunk of `t_chunk` timesteps per grid iteration.

    x_ref:   (T*Bp, D)  f32   chunk of inputs, time-major, batch-padded
    wxh_ref: (D, Hp) bf16, whh_ref: (Hp, Hp) bf16, bh_ref: (1, Hp) f32
    who_ref: (Hp, Cp) bf16, bo_ref: (1, Cp) f32
    out_ref: (Bp, Cp) f32     written only on the last chunk
    h_ref:   (Bp, Hp) f32     VMEM scratch, hidden state, persists across chunks
    xw_ref:  (T*Bp, Hp) f32   VMEM scratch, hoisted input projection
    """
    c = pl.program_id(0)
    bp = h_ref.shape[0]
    has_tail = (seq_len % t_chunk) != 0

    @pl.when(c == 0)
    def _():
        h_ref[...] = jnp.zeros_like(h_ref)

    # Phase 1: hoisted input projection for the whole chunk — one big,
    # lane-dense bf16 MXU matmul with f32 accumulation, off the serial chain.
    xw_ref[...] = (
        jnp.dot(x_ref[...].astype(jnp.bfloat16), wxh_ref[...],
                preferred_element_type=jnp.float32)
        + bh_ref[...]
    )

    # Hoist the recurrent weight read out of the serial loop: loaded from VMEM
    # once per chunk, not once per (unrolled) timestep.
    whh = whh_ref[...]

    # Valid timesteps in this chunk (tail chunk of a non-divisible S is padded
    # with zero rows; those padded steps are masked so h passes through).
    if has_tail:
        t_valid = jnp.minimum(t_chunk, seq_len - c * t_chunk)

    # Phase 2: serial recurrence. Only h @ W_hh (+ add + tanh) is on the
    # latency-critical chain; the loop-carried dependence is just h (f32).
    def step(t, h):
        row = pl.multiple_of(t * bp, 8)
        xw_t = xw_ref[pl.ds(row, bp), :]
        h_new = jnp.tanh(
            xw_t + jnp.dot(h.astype(jnp.bfloat16), whh,
                           preferred_element_type=jnp.float32))
        if has_tail:
            h_new = jnp.where(t < t_valid, h_new, h)
        return h_new

    h_ref[...] = lax.fori_loop(0, t_chunk, step, h_ref[...], unroll=unroll)

    # Phase 3: output projection, executed once on the final chunk.
    @pl.when(c == pl.num_programs(0) - 1)
    def _():
        logits = (
            jnp.dot(h_ref[...].astype(jnp.bfloat16), who_ref[...],
                    preferred_element_type=jnp.float32)
            + bo_ref[...]
        )
        out_ref[...] = logits.astype(out_ref.dtype)


def vanilla_rnn_forward(x, params, *, vmem_budget_fraction=0.8, max_chunk=512):
    """x: (batch, seq, input_dim) float32 -> (batch, num_classes) float32."""
    wxh, whh, bh, who, bo = params
    B, S, D = x.shape
    H = wxh.shape[1]
    C = who.shape[1]

    # Pad to hardware tiles: batch -> sublane multiple (8), hidden/classes ->
    # lane multiples (128). Padded weight rows/cols and bias lanes are zero so
    # padded hidden/class lanes stay exactly 0 through tanh and the recurrence;
    # the output is sliced back below. The (Bp, Cp) output block is lane-dense.
    Bp = _round_up(B, 8)
    Hp = _round_up(H, 128)
    Cp = _round_up(C, 128)

    # ---- VMEM-budget-derived time chunk T (per-generation, not fixed). ----
    capacity = _vmem_capacity_bytes()
    budget = int(capacity * vmem_budget_fraction)
    weight_bytes = (D * Hp + Hp * Hp + Hp * Cp) * 2           # bf16 weights
    bias_bytes = (Hp + Cp) * 4
    # Count weight/bias buffers twice in case the Buffered(1) request falls
    # back to default double buffering; + h scratch + double-buffered output
    # block + 2 MiB slack for compiler temporaries.
    fixed = (2 * weight_bytes + 2 * bias_bytes + Bp * Hp * 4
             + 2 * Bp * Cp * 4 + (2 << 20))
    per_t = Bp * (2 * D * 4 + Hp * 4)    # double-buffered x rows + xw scratch
    t_max = max(1, (budget - fixed) // per_t)
    T = int(min(S, t_max, max_chunk))
    n_chunks = _cdiv(S, T)
    T = _cdiv(S, n_chunks)               # rebalance chunks (prime-S friendly)
    S_pad = n_chunks * T

    need = fixed + per_t * T
    vmem_limit = int(min(capacity, max(need + (8 << 20), 32 << 20)))

    # Time-major reorder fused with the batch/time padding copy; flatten to
    # (S_pad*Bp, D) so chunk c occupies contiguous, 8-aligned sublane rows.
    x_sbd = jnp.transpose(x, (1, 0, 2)).astype(jnp.float32)
    x_p = jnp.pad(x_sbd, ((0, S_pad - S), (0, Bp - B), (0, 0)))
    x_p = x_p.reshape(S_pad * Bp, D)

    # bf16 weights (native MXU path, halves VMEM + vld traffic); f32 biases.
    wxh_p = jnp.pad(wxh, ((0, 0), (0, Hp - H))).astype(jnp.bfloat16)
    whh_p = jnp.pad(whh, ((0, Hp - H), (0, Hp - H))).astype(jnp.bfloat16)
    bh_p = jnp.pad(bh, ((0, 0), (0, Hp - H))).astype(jnp.float32)
    who_p = jnp.pad(who, ((0, Hp - H), (0, Cp - C))).astype(jnp.bfloat16)
    bo_p = jnp.pad(bo, ((0, 0), (0, Cp - C))).astype(jnp.float32)

    unroll = True if T <= 16 else 8      # partial unroll for large chunks

    kernel = functools.partial(rnn_kernel, seq_len=S, t_chunk=T, unroll=unroll)

    cost = pl.CostEstimate(
        flops=int(2 * S * Bp * (D * Hp + Hp * Hp) + 2 * Bp * Hp * Cp),
        transcendentals=int(S * Bp * Hp),
        bytes_accessed=int(S_pad * Bp * D * 4 + weight_bytes + bias_bytes
                           + Bp * Cp * 4),
    )

    def build(single_buffer_weights):
        if single_buffer_weights:
            def const_spec(shape):
                return pl.BlockSpec(shape, lambda c: (0,) * len(shape),
                                    pipeline_mode=pl.Buffered(1))
        else:
            def const_spec(shape):
                return pl.BlockSpec(shape, lambda c: (0,) * len(shape))

        grid_spec = pltpu.PrefetchScalarGridSpec(
            num_scalar_prefetch=0,
            grid=(n_chunks,),
            in_specs=[
                pl.BlockSpec((T * Bp, D), lambda c: (c, 0)),   # x chunk (rows)
                const_spec((D, Hp)),                            # W_xh
                const_spec((Hp, Hp)),                           # W_hh
                const_spec((1, Hp)),                            # b_h
                const_spec((Hp, Cp)),                           # W_ho
                const_spec((1, Cp)),                            # b_o
            ],
            out_specs=pl.BlockSpec((Bp, Cp), lambda c: (0, 0)),  # resident out
            scratch_shapes=[
                pltpu.VMEM((Bp, Hp), jnp.float32),       # hidden state h
                pltpu.VMEM((T * Bp, Hp), jnp.float32),   # hoisted x@W_xh + b_h
            ],
        )
        return pl.pallas_call(
            kernel,
            out_shape=jax.ShapeDtypeStruct((Bp, Cp), jnp.float32),
            grid_spec=grid_spec,
            compiler_params=pltpu.CompilerParams(
                dimension_semantics=("arbitrary",),   # recurrence is serial
                vmem_limit_bytes=vmem_limit,
            ),
            cost_estimate=cost,
        )

    args = (x_p, wxh_p, whh_p, bh_p, who_p, bo_p)
    try:
        out_p = build(True)(*args)
    except Exception:
        # Fallback for JAX builds that do not plumb pipeline_mode=pl.Buffered
        # through pallas_call BlockSpecs; identical semantics, default buffering.
        out_p = build(False)(*args)

    return out_p[:B, :C]


def init_params(key, input_dim, num_hidden, num_classes):
    """Uniform(-stdv, stdv) with stdv = 1/sqrt(num_hidden), matching reset_parameters."""
    stdv = 1.0 / math.sqrt(num_hidden)
    k1, k2, k3, k4, k5 = jax.random.split(key, 5)
    wxh = jax.random.uniform(k1, (input_dim, num_hidden), jnp.float32, -stdv, stdv)
    whh = jax.random.uniform(k2, (num_hidden, num_hidden), jnp.float32, -stdv, stdv)
    bh = jax.random.uniform(k3, (1, num_hidden), jnp.float32, -stdv, stdv)
    who = jax.random.uniform(k4, (num_hidden, num_classes), jnp.float32, -stdv, stdv)
    bo = jax.random.uniform(k5, (1, num_classes), jnp.float32, -stdv, stdv)
    return wxh, whh, bh, who, bo


def reference_forward(x, params):
    """Pure-JAX f32 reference for correctness checking."""
    wxh, whh, bh, who, bo = params
    x_sbd = jnp.transpose(x, (1, 0, 2))
    B = x.shape[0]
    H = wxh.shape[1]
    h = jnp.zeros((B, H), jnp.float32)
    for t in range(x_sbd.shape[0]):
        h = jnp.tanh(x_sbd[t] @ wxh + h @ whh + bh)
    return h @ who + bo


if __name__ == "__main__":
    # Small shapes consistent with the module's constructor / forward.
    batch_size = 4
    seq_length = 8
    input_dim = 16
    num_hidden = 32
    num_classes = 10

    key = jax.random.PRNGKey(0)
    kx, kp = jax.random.split(key)
    x = jax.random.normal(kx, (batch_size, seq_length, input_dim), jnp.float32)
    params = init_params(kp, input_dim, num_hidden, num_classes)

    out = vanilla_rnn_forward(x, params)
    out = jax.block_until_ready(out)

    ref = reference_forward(x, params)
    assert out.shape == (batch_size, num_classes)
    # bf16 weights on the MXU path vs. an f32 reference -> loosened tolerance.
    assert jnp.allclose(out, ref, atol=5e-2, rtol=5e-2), "mismatch vs reference"

    print("KERNEL_OK")
</pallas_src>

<mosaic_0001>
module attributes {stable_mosaic.version = 11 : i64} {
  func.func @rnn_kernel(%arg0: i32, %arg1: memref<64x16xf32, #tpu.memory_space<vmem>>, %arg2: memref<16x128xbf16, #tpu.memory_space<vmem>>, %arg3: memref<128x128xbf16, #tpu.memory_space<vmem>>, %arg4: memref<1x128xf32, #tpu.memory_space<vmem>>, %arg5: memref<128x128xbf16, #tpu.memory_space<vmem>>, %arg6: memref<1x128xf32, #tpu.memory_space<vmem>>, %arg7: memref<8x128xf32, #tpu.memory_space<vmem>>, %arg8: memref<8x128xf32, #tpu.memory_space<vmem>>, %arg9: memref<64x128xf32, #tpu.memory_space<vmem>>) attributes {dimension_semantics = [#tpu.dimension_semantics<arbitrary>], iteration_bounds = array<i64: 1>, scalar_prefetch = 0 : i64, scratch_operands = 2 : i64, tpu.core_type = #tpu.core_type<tc>, window_params = [{transform_indices = @transform_0, window_bounds = array<i64: 64, 16>}, {pipeline_mode = #tpu.pipeline_mode<synchronous>, transform_indices = @transform_1, window_bounds = array<i64: 16, 128>}, {pipeline_mode = #tpu.pipeline_mode<synchronous>, transform_indices = @transform_2, window_bounds = array<i64: 128, 128>}, {pipeline_mode = #tpu.pipeline_mode<synchronous>, transform_indices = @transform_3, window_bounds = array<i64: 1, 128>}, {pipeline_mode = #tpu.pipeline_mode<synchronous>, transform_indices = @transform_4, window_bounds = array<i64: 128, 128>}, {pipeline_mode = #tpu.pipeline_mode<synchronous>, transform_indices = @transform_5, window_bounds = array<i64: 1, 128>}, {pipeline_mode = #tpu.pipeline_mode<synchronous>, transform_indices = @transform_6, window_bounds = array<i64: 8, 128>}]} {
    %c0_i32 = arith.constant 0 : i32
    %0 = arith.cmpi eq, %arg0, %c0_i32 : i32
    %1 = arith.extui %0 : i1 to i32
    %c0_i32_0 = arith.constant 0 : i32
    %2 = arith.cmpi ne, %1, %c0_i32_0 : i32
    scf.if %2 {
      %cst_41 = arith.constant 0.000000e+00 : f32
      %81 = vector.broadcast %cst_41 : f32 to vector<8x128xf32>
      %c0_42 = arith.constant 0 : index
      %c0_43 = arith.constant 0 : index
      %82 = vector.load %arg8[%c0_42, %c0_43] : memref<8x128xf32, #tpu.memory_space<vmem>>, vector<8x128xf32>
      tpu.vector_store %arg8[%c0_42, %c0_43], %81 {strides = array<i32>} : memref<8x128xf32, #tpu.memory_space<vmem>>, vector<8x128xf32>,
    } else {
    }
    %c0 = arith.constant 0 : index
    %c0_1 = arith.constant 0 : index
    %3 = vector.load %arg1[%c0, %c0_1] : memref<64x16xf32, #tpu.memory_space<vmem>>, vector<64x16xf32>
    %4 = arith.truncf %3 : vector<64x16xf32> to vector<64x16xbf16>
    %c0_2 = arith.constant 0 : index
    %c0_3 = arith.constant 0 : index
    %5 = vector.load %arg2[%c0_2, %c0_3] : memref<16x128xbf16, #tpu.memory_space<vmem>>, vector<16x128xbf16>
    %cst = arith.constant dense<0.000000e+00> : vector<64x128xf32>
    %6 = tpu.matmul %4, %5, %cst {dimension_numbers = #tpu.dot_dimension_numbers<[1], [0], [0], [1], [0, 0, 1, 1], [], []>} : vector<64x16xbf16>, vector<16x128xbf16>, vector<64x128xf32> -> vector<64x128xf32>
    %c0_4 = arith.constant 0 : index
    %c0_5 = arith.constant 0 : index
    %7 = vector.load %arg4[%c0_4, %c0_5] : memref<1x128xf32, #tpu.memory_space<vmem>>, vector<1x128xf32>
    %8 = vector.broadcast %7 : vector<1x128xf32> to vector<64x128xf32>
    %9 = arith.addf %6, %8 : vector<64x128xf32>
    %c0_6 = arith.constant 0 : index
    %c0_7 = arith.constant 0 : index
    %10 = vector.load %arg9[%c0_6, %c0_7] : memref<64x128xf32, #tpu.memory_space<vmem>>, vector<64x128xf32>
    tpu.vector_store %arg9[%c0_6, %c0_7], %9 {strides = array<i32>} : memref<64x128xf32, #tpu.memory_space<vmem>>, vector<64x128xf32>,
    %c0_8 = arith.constant 0 : index
    %c0_9 = arith.constant 0 : index
    %11 = vector.load %arg3[%c0_8, %c0_9] : memref<128x128xbf16, #tpu.memory_space<vmem>>, vector<128x128xbf16>
    %c0_10 = arith.constant 0 : index
    %c0_11 = arith.constant 0 : index
    %12 = vector.load %arg8[%c0_10, %c0_11] : memref<8x128xf32, #tpu.memory_space<vmem>>, vector<8x128xf32>
    %c0_i32_12 = arith.constant 0 : i32
    %c8_i32 = arith.constant 8 : i32
    %13 = arith.muli %c0_i32_12, %c8_i32 : i32
    %14 = tpu.assume_multiple %13, 8 : i32
    %15 = arith.index_cast %14 : i32 to index
    %c0_13 = arith.constant 0 : index
    %16 = vector.load %arg9[%15, %c0_13] : memref<64x128xf32, #tpu.memory_space<vmem>>, vector<8x128xf32>
    %17 = arith.truncf %12 : vector<8x128xf32> to vector<8x128xbf16>
    %cst_14 = arith.constant dense<0.000000e+00> : vector<8x128xf32>
    %18 = tpu.matmul %17, %11, %cst_14 {dimension_numbers = #tpu.dot_dimension_numbers<[1], [0], [0], [1], [0, 0, 1, 1], [], []>} : vector<8x128xbf16>, vector<128x128xbf16>, vector<8x128xf32> -> vector<8x128xf32>
    %19 = arith.addf %16, %18 : vector<8x128xf32>
    %20 = math.tanh %19 : vector<8x128xf32>
    %c1_i32 = arith.constant 1 : i32
    %c8_i32_15 = arith.constant 8 : i32
    %21 = arith.muli %c1_i32, %c8_i32_15 : i32
    %22 = tpu.assume_multiple %21, 8 : i32
    %23 = arith.index_cast %22 : i32 to index
    %c0_16 = arith.constant 0 : index
    %24 = vector.load %arg9[%23, %c0_16] : memref<64x128xf32, #tpu.memory_space<vmem>>, vector<8x128xf32>
    %25 = arith.truncf %20 : vector<8x128xf32> to vector<8x128xbf16>
    %cst_17 = arith.constant dense<0.000000e+00> : vector<8x128xf32>
    %26 = tpu.matmul %25, %11, %cst_17 {dimension_numbers = #tpu.dot_dimension_numbers<[1], [0], [0], [1], [0, 0, 1, 1], [], []>} : vector<8x128xbf16>, vector<128x128xbf16>, vector<8x128xf32> -> vector<8x128xf32>
    %27 = arith.addf %24, %26 : vector<8x128xf32>
    %28 = math.tanh %27 : vector<8x128xf32>
    %c2_i32 = arith.constant 2 : i32
    %c8_i32_18 = arith.constant 8 : i32
    %29 = arith.muli %c2_i32, %c8_i32_18 : i32
    %30 = tpu.assume_multiple %29, 8 : i32
    %31 = arith.index_cast %30 : i32 to index
    %c0_19 = arith.constant 0 : index
    %32 = vector.load %arg9[%31, %c0_19] : memref<64x128xf32, #tpu.memory_space<vmem>>, vector<8x128xf32>
    %33 = arith.truncf %28 : vector<8x128xf32> to vector<8x128xbf16>
    %cst_20 = arith.constant dense<0.000000e+00> : vector<8x128xf32>
    %34 = tpu.matmul %33, %11, %cst_20 {dimension_numbers = #tpu.dot_dimension_numbers<[1], [0], [0], [1], [0, 0, 1, 1], [], []>} : vector<8x128xbf16>, vector<128x128xbf16>, vector<8x128xf32> -> vector<8x128xf32>
    %35 = arith.addf %32, %34 : vector<8x128xf32>
    %36 = math.tanh %35 : vector<8x128xf32>
    %c3_i32 = arith.constant 3 : i32
    %c8_i32_21 = arith.constant 8 : i32
    %37 = arith.muli %c3_i32, %c8_i32_21 : i32
    %38 = tpu.assume_multiple %37, 8 : i32
    %39 = arith.index_cast %38 : i32 to index
    %c0_22 = arith.constant 0 : index
    %40 = vector.load %arg9[%39, %c0_22] : memref<64x128xf32, #tpu.memory_space<vmem>>, vector<8x128xf32>
    %41 = arith.truncf %36 : vector<8x128xf32> to vector<8x128xbf16>
    %cst_23 = arith.constant dense<0.000000e+00> : vector<8x128xf32>
    %42 = tpu.matmul %41, %11, %cst_23 {dimension_numbers = #tpu.dot_dimension_numbers<[1], [0], [0], [1], [0, 0, 1, 1], [], []>} : vector<8x128xbf16>, vector<128x128xbf16>, vector<8x128xf32> -> vector<8x128xf32>
    %43 = arith.addf %40, %42 : vector<8x128xf32>
    %44 = math.tanh %43 : vector<8x128xf32>
    %c4_i32 = arith.constant 4 : i32
    %c8_i32_24 = arith.constant 8 : i32
    %45 = arith.muli %c4_i32, %c8_i32_24 : i32
    %46 = tpu.assume_multiple %45, 8 : i32
    %47 = arith.index_cast %46 : i32 to index
    %c0_25 = arith.constant 0 : index
    %48 = vector.load %arg9[%47, %c0_25] : memref<64x128xf32, #tpu.memory_space<vmem>>, vector<8x128xf32>
    %49 = arith.truncf %44 : vector<8x128xf32> to vector<8x128xbf16>
    %cst_26 = arith.constant dense<0.000000e+00> : vector<8x128xf32>
    %50 = tpu.matmul %49, %11, %cst_26 {dimension_numbers = #tpu.dot_dimension_numbers<[1], [0], [0], [1], [0, 0, 1, 1], [], []>} : vector<8x128xbf16>, vector<128x128xbf16>, vector<8x128xf32> -> vector<8x128xf32>
    %51 = arith.addf %48, %50 : vector<8x128xf32>
    %52 = math.tanh %51 : vector<8x128xf32>
    %c5_i32 = arith.constant 5 : i32
    %c8_i32_27 = arith.constant 8 : i32
    %53 = arith.muli %c5_i32, %c8_i32_27 : i32
    %54 = tpu.assume_multiple %53, 8 : i32
    %55 = arith.index_cast %54 : i32 to index
    %c0_28 = arith.constant 0 : index
    %56 = vector.load %arg9[%55, %c0_28] : memref<64x128xf32, #tpu.memory_space<vmem>>, vector<8x128xf32>
    %57 = arith.truncf %52 : vector<8x128xf32> to vector<8x128xbf16>
    %cst_29 = arith.constant dense<0.000000e+00> : vector<8x128xf32>
    %58 = tpu.matmul %57, %11, %cst_29 {dimension_numbers = #tpu.dot_dimension_numbers<[1], [0], [0], [1], [0, 0, 1, 1], [], []>} : vector<8x128xbf16>, vector<128x128xbf16>, vector<8x128xf32> -> vector<8x128xf32>
    %59 = arith.addf %56, %58 : vector<8x128xf32>
    %60 = math.tanh %59 : vector<8x128xf32>
    %c6_i32 = arith.constant 6 : i32
    %c8_i32_30 = arith.constant 8 : i32
    %61 = arith.muli %c6_i32, %c8_i32_30 : i32
    %62 = tpu.assume_multiple %61, 8 : i32
    %63 = arith.index_cast %62 : i32 to index
    %c0_31 = arith.constant 0 : index
    %64 = vector.load %arg9[%63, %c0_31] : memref<64x128xf32, #tpu.memory_space<vmem>>, vector<8x128xf32>
    %65 = arith.truncf %60 : vector<8x128xf32> to vector<8x128xbf16>
    %cst_32 = arith.constant dense<0.000000e+00> : vector<8x128xf32>
    %66 = tpu.matmul %65, %11, %cst_32 {dimension_numbers = #tpu.dot_dimension_numbers<[1], [0], [0], [1], [0, 0, 1, 1], [], []>} : vector<8x128xbf16>, vector<128x128xbf16>, vector<8x128xf32> -> vector<8x128xf32>
    %67 = arith.addf %64, %66 : vector<8x128xf32>
    %68 = math.tanh %67 : vector<8x128xf32>
    %c7_i32 = arith.constant 7 : i32
    %c8_i32_33 = arith.constant 8 : i32
    %69 = arith.muli %c7_i32, %c8_i32_33 : i32
    %70 = tpu.assume_multiple %69, 8 : i32
    %71 = arith.index_cast %70 : i32 to index
    %c0_34 = arith.constant 0 : index
    %72 = vector.load %arg9[%71, %c0_34] : memref<64x128xf32, #tpu.memory_space<vmem>>, vector<8x128xf32>
    %73 = arith.truncf %68 : vector<8x128xf32> to vector<8x128xbf16>
    %cst_35 = arith.constant dense<0.000000e+00> : vector<8x128xf32>
    %74 = tpu.matmul %73, %11, %cst_35 {dimension_numbers = #tpu.dot_dimension_numbers<[1], [0], [0], [1], [0, 0, 1, 1], [], []>} : vector<8x128xbf16>, vector<128x128xbf16>, vector<8x128xf32> -> vector<8x128xf32>
    %75 = arith.addf %72, %74 : vector<8x128xf32>
    %76 = math.tanh %75 : vector<8x128xf32>
    %c8_i32_36 = arith.constant 8 : i32
    %c0_37 = arith.constant 0 : index
    %c0_38 = arith.constant 0 : index
    %77 = vector.load %arg8[%c0_37, %c0_38] : memref<8x128xf32, #tpu.memory_space<vmem>>, vector<8x128xf32>
    tpu.vector_store %arg8[%c0_37, %c0_38], %76 {strides = array<i32>} : memref<8x128xf32, #tpu.memory_space<vmem>>, vector<8x128xf32>,
    %c0_i32_39 = arith.constant 0 : i32
    %78 = arith.cmpi eq, %arg0, %c0_i32_39 : i32
    %79 = arith.extui %78 : i1 to i32
    %c0_i32_40 = arith.constant 0 : i32
    %80 = arith.cmpi ne, %79, %c0_i32_40 : i32
    scf.if %80 {
      %c0_41 = arith.constant 0 : index
      %c0_42 = arith.constant 0 : index
      %81 = vector.load %arg8[%c0_41, %c0_42] : memref<8x128xf32, #tpu.memory_space<vmem>>, vector<8x128xf32>
      %82 = arith.truncf %81 : vector<8x128xf32> to vector<8x128xbf16>
      %c0_43 = arith.constant 0 : index
      %c0_44 = arith.constant 0 : index
      %83 = vector.load %arg5[%c0_43, %c0_44] : memref<128x128xbf16, #tpu.memory_space<vmem>>, vector<128x128xbf16>
      %cst_45 = arith.constant dense<0.000000e+00> : vector<8x128xf32>
      %84 = tpu.matmul %82, %83, %cst_45 {dimension_numbers = #tpu.dot_dimension_numbers<[1], [0], [0], [1], [0, 0, 1, 1], [], []>} : vector<8x128xbf16>, vector<128x128xbf16>, vector<8x128xf32> -> vector<8x128xf32>
      %c0_46 = arith.constant 0 : index
      %c0_47 = arith.constant 0 : index
      %85 = vector.load %arg6[%c0_46, %c0_47] : memref<1x128xf32, #tpu.memory_space<vmem>>, vector<1x128xf32>
      %86 = vector.broadcast %85 : vector<1x128xf32> to vector<8x128xf32>
      %87 = arith.addf %84, %86 : vector<8x128xf32>
      %c0_48 = arith.constant 0 : index
      %c0_49 = arith.constant 0 : index
      %88 = vector.load %arg7[%c0_48, %c0_49] : memref<8x128xf32, #tpu.memory_space<vmem>>, vector<8x128xf32>
      tpu.vector_store %arg7[%c0_48, %c0_49], %87 {strides = array<i32>} : memref<8x128xf32, #tpu.memory_space<vmem>>, vector<8x128xf32>,
    } else {
    }
    return
  }
  func.func @transform_0(%arg0: i32) -> (i32, i32) {
    %c0_i32 = arith.constant 0 : i32
    %c0_i32_0 = arith.constant 0 : i32
    return %arg0, %c0_i32 : i32, i32
  }
  func.func @transform_1(%arg0: i32) -> (i32, i32) {
    %c0_i32 = arith.constant 0 : i32
    %c0_i32_0 = arith.constant 0 : i32
    %c0_i32_1 = arith.constant 0 : i32
    return %c0_i32, %c0_i32_0 : i32, i32
  }
  func.func @transform_2(%arg0: i32) -> (i32, i32) {
    %c0_i32 = arith.constant 0 : i32
    %c0_i32_0 = arith.constant 0 : i32
    %c0_i32_1 = arith.constant 0 : i32
    return %c0_i32, %c0_i32_0 : i32, i32
  }
  func.func @transform_3(%arg0: i32) -> (i32, i32) {
    %c0_i32 = arith.constant 0 : i32
    %c0_i32_0 = arith.constant 0 : i32
    %c0_i32_1 = arith.constant 0 : i32
    return %c0_i32, %c0_i32_0 : i32, i32
  }
  func.func @transform_4(%arg0: i32) -> (i32, i32) {
    %c0_i32 = arith.constant 0 : i32
    %c0_i32_0 = arith.constant 0 : i32
    %c0_i32_1 = arith.constant 0 : i32
    return %c0_i32, %c0_i32_0 : i32, i32
  }
  func.func @transform_5(%arg0: i32) -> (i32, i32) {
    %c0_i32 = arith.constant 0 : i32
    %c0_i32_0 = arith.constant 0 : i32
    %c0_i32_1 = arith.constant 0 : i32
    return %c0_i32, %c0_i32_0 : i32, i32
  }
  func.func @transform_6(%arg0: i32) -> (i32, i32) {
    %c0_i32 = arith.constant 0 : i32
    %c0_i32_0 = arith.constant 0 : i32
    %c0_i32_1 = arith.constant 0 : i32
    return %c0_i32, %c0_i32_0 : i32, i32
  }
}

module attributes {stable_mosaic.version = 11 : i64} {
  func.func @rnn_kernel(%arg0: i32, %arg1: memref<64x16xf32, #tpu.memory_space<vmem>>, %arg2: memref<16x128xbf16, #tpu.memory_space<vmem>>, %arg3: memref<128x128xbf16, #tpu.memory_space<vmem>>, %arg4: memref<1x128xf32, #tpu.memory_space<vmem>>, %arg5: memref<128x128xbf16, #tpu.memory_space<vmem>>, %arg6: memref<1x128xf32, #tpu.memory_space<vmem>>, %arg7: memref<8x128xf32, #tpu.memory_space<vmem>>, %arg8: memref<8x128xf32, #tpu.memory_space<vmem>>, %arg9: memref<64x128xf32, #tpu.memory_space<vmem>>) attributes {dimension_semantics = [#tpu.dimension_semantics<arbitrary>], iteration_bounds = array<i64: 1>, scalar_prefetch = 0 : i64, scratch_operands = 2 : i64, tpu.core_type = #tpu.core_type<tc>, window_params = [{transform_indices = @transform_0, window_bounds = array<i64: 64, 16>}, {pipeline_mode = #tpu.pipeline_mode<synchronous>, transform_indices = @transform_1, window_bounds = array<i64: 16, 128>}, {pipeline_mode = #tpu.pipeline_mode<synchronous>, transform_indices = @transform_2, window_bounds = array<i64: 128, 128>}, {pipeline_mode = #tpu.pipeline_mode<synchronous>, transform_indices = @transform_3, window_bounds = array<i64: 1, 128>}, {pipeline_mode = #tpu.pipeline_mode<synchronous>, transform_indices = @transform_4, window_bounds = array<i64: 128, 128>}, {pipeline_mode = #tpu.pipeline_mode<synchronous>, transform_indices = @transform_5, window_bounds = array<i64: 1, 128>}, {pipeline_mode = #tpu.pipeline_mode<synchronous>, transform_indices = @transform_6, window_bounds = array<i64: 8, 128>}]} {
    %c0_i32 = arith.constant 0 : i32
    %0 = arith.cmpi eq, %arg0, %c0_i32 : i32
    %1 = arith.extui %0 : i1 to i32
    %c0_i32_0 = arith.constant 0 : i32
    %2 = arith.cmpi ne, %1, %c0_i32_0 : i32
    scf.if %2 {
      %cst_41 = arith.constant 0.000000e+00 : f32
      %81 = vector.broadcast %cst_41 : f32 to vector<8x128xf32>
      %c0_42 = arith.constant 0 : index
      %c0_43 = arith.constant 0 : index
      %82 = vector.load %arg8[%c0_42, %c0_43] : memref<8x128xf32, #tpu.memory_space<vmem>>, vector<8x128xf32>
      tpu.vector_store %arg8[%c0_42, %c0_43], %81 {strides = array<i32>} : memref<8x128xf32, #tpu.memory_space<vmem>>, vector<8x128xf32>,
    } else {
    }
    %c0 = arith.constant 0 : index
    %c0_1 = arith.constant 0 : index
    %3 = vector.load %arg1[%c0, %c0_1] : memref<64x16xf32, #tpu.memory_space<vmem>>, vector<64x16xf32>
    %4 = arith.truncf %3 : vector<64x16xf32> to vector<64x16xbf16>
    %c0_2 = arith.constant 0 : index
    %c0_3 = arith.constant 0 : index
    %5 = vector.load %arg2[%c0_2, %c0_3] : memref<16x128xbf16, #tpu.memory_space<vmem>>, vector<16x128xbf16>
    %cst = arith.constant dense<0.000000e+00> : vector<64x128xf32>
    %6 = tpu.matmul %4, %5, %cst {dimension_numbers = #tpu.dot_dimension_numbers<[1], [0], [0], [1], [0, 0, 1, 1], [], []>} : vector<64x16xbf16>, vector<16x128xbf16>, vector<64x128xf32> -> vector<64x128xf32>
    %c0_4 = arith.constant 0 : index
    %c0_5 = arith.constant 0 : index
    %7 = vector.load %arg4[%c0_4, %c0_5] : memref<1x128xf32, #tpu.memory_space<vmem>>, vector<1x128xf32>
    %8 = vector.broadcast %7 : vector<1x128xf32> to vector<64x128xf32>
    %9 = arith.addf %6, %8 : vector<64x128xf32>
    %c0_6 = arith.constant 0 : index
    %c0_7 = arith.constant 0 : index
    %10 = vector.load %arg9[%c0_6, %c0_7] : memref<64x128xf32, #tpu.memory_space<vmem>>, vector<64x128xf32>
    tpu.vector_store %arg9[%c0_6, %c0_7], %9 {strides = array<i32>} : memref<64x128xf32, #tpu.memory_space<vmem>>, vector<64x128xf32>,
    %c0_8 = arith.constant 0 : index
    %c0_9 = arith.constant 0 : index
    %11 = vector.load %arg3[%c0_8, %c0_9] : memref<128x128xbf16, #tpu.memory_space<vmem>>, vector<128x128xbf16>
    %c0_10 = arith.constant 0 : index
    %c0_11 = arith.constant 0 : index
    %12 = vector.load %arg8[%c0_10, %c0_11] : memref<8x128xf32, #tpu.memory_space<vmem>>, vector<8x128xf32>
    %c0_i32_12 = arith.constant 0 : i32
    %c8_i32 = arith.constant 8 : i32
    %13 = arith.muli %c0_i32_12, %c8_i32 : i32
    %14 = tpu.assume_multiple %13, 8 : i32
    %15 = arith.index_cast %14 : i32 to index
    %c0_13 = arith.constant 0 : index
    %16 = vector.load %arg9[%15, %c0_13] : memref<64x128xf32, #tpu.memory_space<vmem>>, vector<8x128xf32>
    %17 = arith.truncf %12 : vector<8x128xf32> to vector<8x128xbf16>
    %cst_14 = arith.constant dense<0.000000e+00> : vector<8x128xf32>
    %18 = tpu.matmul %17, %11, %cst_14 {dimension_numbers = #tpu.dot_dimension_numbers<[1], [0], [0], [1], [0, 0, 1, 1], [], []>} : vector<8x128xbf16>, vector<128x128xbf16>, vector<8x128xf32> -> vector<8x128xf32>
    %19 = arith.addf %16, %18 : vector<8x128xf32>
    %20 = math.tanh %19 : vector<8x128xf32>
    %c1_i32 = arith.constant 1 : i32
    %c8_i32_15 = arith.constant 8 : i32
    %21 = arith.muli %c1_i32, %c8_i32_15 : i32
    %22 = tpu.assume_multiple %21, 8 : i32
    %23 = arith.index_cast %22 : i32 to index
    %c0_16 = arith.constant 0 : index
    %24 = vector.load %arg9[%23, %c0_16] : memref<64x128xf32, #tpu.memory_space<vmem>>, vector<8x128xf32>
    %25 = arith.truncf %20 : vector<8x128xf32> to vector<8x128xbf16>
    %cst_17 = arith.constant dense<0.000000e+00> : vector<8x128xf32>
    %26 = tpu.matmul %25, %11, %cst_17 {dimension_numbers = #tpu.dot_dimension_numbers<[1], [0], [0], [1], [0, 0, 1, 1], [], []>} : vector<8x128xbf16>, vector<128x128xbf16>, vector<8x128xf32> -> vector<8x128xf32>
    %27 = arith.addf %24, %26 : vector<8x128xf32>
    %28 = math.tanh %27 : vector<8x128xf32>
    %c2_i32 = arith.constant 2 : i32
    %c8_i32_18 = arith.constant 8 : i32
    %29 = arith.muli %c2_i32, %c8_i32_18 : i32
    %30 = tpu.assume_multiple %29, 8 : i32
    %31 = arith.index_cast %30 : i32 to index
    %c0_19 = arith.constant 0 : index
    %32 = vector.load %arg9[%31, %c0_19] : memref<64x128xf32, #tpu.memory_space<vmem>>, vector<8x128xf32>
    %33 = arith.truncf %28 : vector<8x128xf32> to vector<8x128xbf16>
    %cst_20 = arith.constant dense<0.000000e+00> : vector<8x128xf32>
    %34 = tpu.matmul %33, %11, %cst_20 {dimension_numbers = #tpu.dot_dimension_numbers<[1], [0], [0], [1], [0, 0, 1, 1], [], []>} : vector<8x128xbf16>, vector<128x128xbf16>, vector<8x128xf32> -> vector<8x128xf32>
    %35 = arith.addf %32, %34 : vector<8x128xf32>
    %36 = math.tanh %35 : vector<8x128xf32>
    %c3_i32 = arith.constant 3 : i32
    %c8_i32_21 = arith.constant 8 : i32
    %37 = arith.muli %c3_i32, %c8_i32_21 : i32
    %38 = tpu.assume_multiple %37, 8 : i32
    %39 = arith.index_cast %38 : i32 to index
    %c0_22 = arith.constant 0 : index
    %40 = vector.load %arg9[%39, %c0_22] : memref<64x128xf32, #tpu.memory_space<vmem>>, vector<8x128xf32>
    %41 = arith.truncf %36 : vector<8x128xf32> to vector<8x128xbf16>
    %cst_23 = arith.constant dense<0.000000e+00> : vector<8x128xf32>
    %42 = tpu.matmul %41, %11, %cst_23 {dimension_numbers = #tpu.dot_dimension_numbers<[1], [0], [0], [1], [0, 0, 1, 1], [], []>} : vector<8x128xbf16>, vector<128x128xbf16>, vector<8x128xf32> -> vector<8x128xf32>
    %43 = arith.addf %40, %42 : vector<8x128xf32>
    %44 = math.tanh %43 : vector<8x128xf32>
    %c4_i32 = arith.constant 4 : i32
    %c8_i32_24 = arith.constant 8 : i32
    %45 = arith.muli %c4_i32, %c8_i32_24 : i32
    %46 = tpu.assume_multiple %45, 8 : i32
    %47 = arith.index_cast %46 : i32 to index
    %c0_25 = arith.constant 0 : index
    %48 = vector.load %arg9[%47, %c0_25] : memref<64x128xf32, #tpu.memory_space<vmem>>, vector<8x128xf32>
    %49 = arith.truncf %44 : vector<8x128xf32> to vector<8x128xbf16>
    %cst_26 = arith.constant dense<0.000000e+00> : vector<8x128xf32>
    %50 = tpu.matmul %49, %11, %cst_26 {dimension_numbers = #tpu.dot_dimension_numbers<[1], [0], [0], [1], [0, 0, 1, 1], [], []>} : vector<8x128xbf16>, vector<128x128xbf16>, vector<8x128xf32> -> vector<8x128xf32>
    %51 = arith.addf %48, %50 : vector<8x128xf32>
    %52 = math.tanh %51 : vector<8x128xf32>
    %c5_i32 = arith.constant 5 : i32
    %c8_i32_27 = arith.constant 8 : i32
    %53 = arith.muli %c5_i32, %c8_i32_27 : i32
    %54 = tpu.assume_multiple %53, 8 : i32
    %55 = arith.index_cast %54 : i32 to index
    %c0_28 = arith.constant 0 : index
    %56 = vector.load %arg9[%55, %c0_28] : memref<64x128xf32, #tpu.memory_space<vmem>>, vector<8x128xf32>
    %57 = arith.truncf %52 : vector<8x128xf32> to vector<8x128xbf16>
    %cst_29 = arith.constant dense<0.000000e+00> : vector<8x128xf32>
    %58 = tpu.matmul %57, %11, %cst_29 {dimension_numbers = #tpu.dot_dimension_numbers<[1], [0], [0], [1], [0, 0, 1, 1], [], []>} : vector<8x128xbf16>, vector<128x128xbf16>, vector<8x128xf32> -> vector<8x128xf32>
    %59 = arith.addf %56, %58 : vector<8x128xf32>
    %60 = math.tanh %59 : vector<8x128xf32>
    %c6_i32 = arith.constant 6 : i32
    %c8_i32_30 = arith.constant 8 : i32
    %61 = arith.muli %c6_i32, %c8_i32_30 : i32
    %62 = tpu.assume_multiple %61, 8 : i32
    %63 = arith.index_cast %62 : i32 to index
    %c0_31 = arith.constant 0 : index
    %64 = vector.load %arg9[%63, %c0_31] : memref<64x128xf32, #tpu.memory_space<vmem>>, vector<8x128xf32>
    %65 = arith.truncf %60 : vector<8x128xf32> to vector<8x128xbf16>
    %cst_32 = arith.constant dense<0.000000e+00> : vector<8x128xf32>
    %66 = tpu.matmul %65, %11, %cst_32 {dimension_numbers = #tpu.dot_dimension_numbers<[1], [0], [0], [1], [0, 0, 1, 1], [], []>} : vector<8x128xbf16>, vector<128x128xbf16>, vector<8x128xf32> -> vector<8x128xf32>
    %67 = arith.addf %64, %66 : vector<8x128xf32>
    %68 = math.tanh %67 : vector<8x128xf32>
    %c7_i32 = arith.constant 7 : i32
    %c8_i32_33 = arith.constant 8 : i32
    %69 = arith.muli %c7_i32, %c8_i32_33 : i32
    %70 = tpu.assume_multiple %69, 8 : i32
    %71 = arith.index_cast %70 : i32 to index
    %c0_34 = arith.constant 0 : index
    %72 = vector.load %arg9[%71, %c0_34] : memref<64x128xf32, #tpu.memory_space<vmem>>, vector<8x128xf32>
    %73 = arith.truncf %68 : vector<8x128xf32> to vector<8x128xbf16>
    %cst_35 = arith.constant dense<0.000000e+00> : vector<8x128xf32>
    %74 = tpu.matmul %73, %11, %cst_35 {dimension_numbers = #tpu.dot_dimension_numbers<[1], [0], [0], [1], [0, 0, 1, 1], [], []>} : vector<8x128xbf16>, vector<128x128xbf16>, vector<8x128xf32> -> vector<8x128xf32>
    %75 = arith.addf %72, %74 : vector<8x128xf32>
    %76 = math.tanh %75 : vector<8x128xf32>
    %c8_i32_36 = arith.constant 8 : i32
    %c0_37 = arith.constant 0 : index
    %c0_38 = arith.constant 0 : index
    %77 = vector.load %arg8[%c0_37, %c0_38] : memref<8x128xf32, #tpu.memory_space<vmem>>, vector<8x128xf32>
    tpu.vector_store %arg8[%c0_37, %c0_38], %76 {strides = array<i32>} : memref<8x128xf32, #tpu.memory_space<vmem>>, vector<8x128xf32>,
    %c0_i32_39 = arith.constant 0 : i32
    %78 = arith.cmpi eq, %arg0, %c0_i32_39 : i32
    %79 = arith.extui %78 : i1 to i32
    %c0_i32_40 = arith.constant 0 : i32
    %80 = arith.cmpi ne, %79, %c0_i32_40 : i32
    scf.if %80 {
      %c0_41 = arith.constant 0 : index
      %c0_42 = arith.constant 0 : index
      %81 = vector.load %arg8[%c0_41, %c0_42] : memref<8x128xf32, #tpu.memory_space<vmem>>, vector<8x128xf32>
      %82 = arith.truncf %81 : vector<8x128xf32> to vector<8x128xbf16>
      %c0_43 = arith.constant 0 : index
      %c0_44 = arith.constant 0 : index
      %83 = vector.load %arg5[%c0_43, %c0_44] : memref<128x128xbf16, #tpu.memory_space<vmem>>, vector<128x128xbf16>
      %cst_45 = arith.constant dense<0.000000e+00> : vector<8x128xf32>
      %84 = tpu.matmul %82, %83, %cst_45 {dimension_numbers = #tpu.dot_dimension_numbers<[1], [0], [0], [1], [0, 0, 1, 1], [], []>} : vector<8x128xbf16>, vector<128x128xbf16>, vector<8x128xf32> -> vector<8x128xf32>
      %c0_46 = arith.constant 0 : index
      %c0_47 = arith.constant 0 : index
      %85 = vector.load %arg6[%c0_46, %c0_47] : memref<1x128xf32, #tpu.memory_space<vmem>>, vector<1x128xf32>
      %86 = vector.broadcast %85 : vector<1x128xf32> to vector<8x128xf32>
      %87 = arith.addf %84, %86 : vector<8x128xf32>
      %c0_48 = arith.constant 0 : index
      %c0_49 = arith.constant 0 : index
      %88 = vector.load %arg7[%c0_48, %c0_49] : memref<8x128xf32, #tpu.memory_space<vmem>>, vector<8x128xf32>
      tpu.vector_store %arg7[%c0_48, %c0_49], %87 {strides = array<i32>} : memref<8x128xf32, #tpu.memory_space<vmem>>, vector<8x128xf32>,
    } else {
    }
    return
  }
  func.func @transform_0(%arg0: i32) -> (i32, i32) {
    %c0_i32 = arith.constant 0 : i32
    %c0_i32_0 = arith.constant 0 : i32
    return %arg0, %c0_i32 : i32, i32
  }
  func.func @transform_1(%arg0: i32) -> (i32, i32) {
    %c0_i32 = arith.constant 0 : i32
    %c0_i32_0 = arith.constant 0 : i32
    %c0_i32_1 = arith.constant 0 : i32
    return %c0_i32, %c0_i32_0 : i32, i32
  }
  func.func @transform_2(%arg0: i32) -> (i32, i32) {
    %c0_i32 = arith.constant 0 : i32
    %c0_i32_0 = arith.constant 0 : i32
    %c0_i32_1 = arith.constant 0 : i32
    return %c0_i32, %c0_i32_0 : i32, i32
  }
  func.func @transform_3(%arg0: i32) -> (i32, i32) {
    %c0_i32 = arith.constant 0 : i32
    %c0_i32_0 = arith.constant 0 : i32
    %c0_i32_1 = arith.constant 0 : i32
    return %c0_i32, %c0_i32_0 : i32, i32
  }
  func.func @transform_4(%arg0: i32) -> (i32, i32) {
    %c0_i32 = arith.constant 0 : i32
    %c0_i32_0 = arith.constant 0 : i32
    %c0_i32_1 = arith.constant 0 : i32
    return %c0_i32, %c0_i32_0 : i32, i32
  }
  func.func @transform_5(%arg0: i32) -> (i32, i32) {
    %c0_i32 = arith.constant 0 : i32
    %c0_i32_0 = arith.constant 0 : i32
    %c0_i32_1 = arith.constant 0 : i32
    return %c0_i32, %c0_i32_0 : i32, i32
  }
  func.func @transform_6(%arg0: i32) -> (i32, i32) {
    %c0_i32 = arith.constant 0 : i32
    %c0_i32_0 = arith.constant 0 : i32
    %c0_i32_1 = arith.constant 0 : i32
    return %c0_i32, %c0_i32_0 : i32, i32
  }
}

</mosaic_0001>

<llo_original>
// kernel: tpu_custom_call.1
$region0: #{tpu_custom_call.1}
  #allocation0 [shape = 'u32[]', space=smem, size = 0x4, offset = 0x4, fixed_abs, tag = 'smem constant byte address 0x4 - core index']
  #allocation1 [shape = 'u32[144,128]{1,0:T(1,128)}', space=vmem, size = 0x12000, scoped, tag = 'internal scratch']
  #allocation2 [shape = 'f32[8,128]{1,0:T(8,128)}', space=vmem, size = 0x1000, scoped, tag = 'scratch operand']
  #allocation3 [shape = 'f32[64,128]{1,0:T(8,128)}', space=vmem, size = 0x8000, scoped, tag = 'scratch operand']
  %s0 = inlined_call_operand.vmem [shape: f32[64,16], index: 0, kind: input, shape index: {}]
  %s1 = inlined_call_operand.vmem [shape: bf16[16,128], index: 1, kind: input, shape index: {}]
  %s2 = inlined_call_operand.vmem [shape: bf16[128,128], index: 2, kind: input, shape index: {}]
  %s3 = inlined_call_operand.vmem [shape: f32[1,128], index: 3, kind: input, shape index: {}]
  %s4 = inlined_call_operand.hbm [shape: bf16[128,128], index: 4, kind: input, shape index: {}]
  %s5 = inlined_call_operand.vmem [shape: f32[1,128], index: 5, kind: input, shape index: {}]
  %s6 = inlined_call_operand.hbm [shape: f32[8,128], index: 6, kind: output, shape index: {}]
  %s7 = sld [smem:[#allocation0]]
  $region46: #{tpu_custom_call.1} parent=0
    _
  %s9 = ssub.s32 1, %s7
  %s10 = scalar_select 0, %s9, %s7
  $region1: #{tpu_custom_call.1} parent=0
    #allocation4 [shape = 'u8[32768]{0}', space=vmem, size = 0x8000, scoped, tag = 'input window, operand 4, single buffered']
    #allocation5 [shape = 's32[1]{0}', space=sflag, size = 0x4, scoped, tag = 'scoped memory for tpu_custom_call.1']
    #allocation6 [shape = 's32[1]{0}', space=sflag, size = 0x4, scoped, tag = 'scoped memory for tpu_custom_call.1']
    #allocation7 [shape = 'u8[4096]{0}', space=vmem, size = 0x1000, scoped, tag = 'output window, operand 0, single buffered']
    %11 = vsyncpa [#allocation5], 0
    %12 = vsyncpa [#allocation6], 0
    // Predicated region
    $region2: #{tpu_custom_call.1} parent=1 // pred_check
      _
    $region3: #{tpu_custom_call.1} parent=1 // pred_check_branch
      %14 = sbr.rel (0) target = $region5
    $region4: #{tpu_custom_call.1} parent=1 // pred_region
      _
    $region5: #{tpu_custom_call.1} parent=1 // pred_fallthru
      _
    // Predicated region
    $region6: #{tpu_custom_call.1} parent=1 // pred_check
      _
    $region7: #{tpu_custom_call.1} parent=1 // pred_check_branch
      %16 = sbr.rel (0) target = $region9
    $region8: #{tpu_custom_call.1} parent=1 // pred_region
      _
    $region9: #{tpu_custom_call.1} parent=1 // pred_fallthru
      _
    // Predicated region
    $region10: #{tpu_custom_call.1} parent=1 // pred_check
      _
    $region11: #{tpu_custom_call.1} parent=1 // pred_check_branch
      %18 = sbr.rel (0) target = $region13
    $region12: #{tpu_custom_call.1} parent=1 // pred_region
      _
    $region13: #{tpu_custom_call.1} parent=1 // pred_fallthru
      _
    // Predicated region
    $region14: #{tpu_custom_call.1} parent=1 // pred_check
      _
    $region15: #{tpu_custom_call.1} parent=1 // pred_check_branch
      %20 = sbr.rel (0) target = $region17
    $region16: #{tpu_custom_call.1} parent=1 // pred_region
      _
    $region17: #{tpu_custom_call.1} parent=1 // pred_fallthru
      _
    // Predicated region
    $region18: #{tpu_custom_call.1} parent=1 // pred_check
      _
    $region19: #{tpu_custom_call.1} parent=1 // pred_check_branch
      %22 = sbr.rel (0) target = $region21
    $region20: #{tpu_custom_call.1} parent=1 // pred_region
      %s24 = ssub.s32 1024, 1024
      %25 = vsyncadd [#allocation5], %s24
      %s26 = sshll.u32 [#allocation4], 4
      %s27 = int_to_ptr.vmem [resolvable:$true] %s26
      %32 = dma.hbm_to_vmem [thread:$0]  %s4, 1024, %s27, [#allocation5], 64, 64, 4
    $region21: #{tpu_custom_call.1} parent=1 // pred_fallthru
      _
    // Predicated region
    $region22: #{tpu_custom_call.1} parent=1 // pred_check
      _
    $region23: #{tpu_custom_call.1} parent=1 // pred_check_branch
      %34 = sbr.rel (0) target = $region25
    $region24: #{tpu_custom_call.1} parent=1 // pred_region
      _
    $region25: #{tpu_custom_call.1} parent=1 // pred_fallthru
      _
    // Predicated region
    $region26: #{tpu_custom_call.1} parent=1 // pred_check
      _
    $region27: #{tpu_custom_call.1} parent=1 // pred_check_branch
      %36 = sbr.rel (0) target = $region29
    $region28: #{tpu_custom_call.1} parent=1 // pred_region
      %37 = dma.done [#allocation5], 1024
    $region29: #{tpu_custom_call.1} parent=1 // pred_fallthru
      _
    %p39 = scmp.eq.s32.totalorder 0, 0
    // Predicated region
    $region30: #{tpu_custom_call.1} parent=1 // pred_check
      %p40 = pneg %p39
    $region31: #{tpu_custom_call.1} parent=1 // pred_check_branch
      %42 = sbr.rel (%p40) target = $region33
    $region32: #{tpu_custom_call.1} parent=1 // pred_region
      %43 = vst [vmem:[#allocation2] sm:$0xff] 0.0
    $region33: #{tpu_custom_call.1} parent=1 // pred_fallthru
      _
    %v44 = vld [vmem:[%s0] sm:$0xff]
    %v45 = vld [vmem:[%s0 + $0x8] sm:$0xff]
    %v46 = vld [vmem:[%s0 + $0x10] sm:$0xff]
    %v47 = vld [vmem:[%s0 + $0x18] sm:$0xff]
    %v48 = vld [vmem:[%s0 + $0x20] sm:$0xff]
    %v49 = vld [vmem:[%s0 + $0x28] sm:$0xff]
    %v50 = vld [vmem:[%s0 + $0x30] sm:$0xff]
    %v51 = vld [vmem:[%s0 + $0x38] sm:$0xff]
    %v52 = vpack.c.bf16 %v45, %v44
    %v53 = vpack.c.bf16 %v47, %v46
    %v54 = vpack.c.bf16 %v49, %v48
    %v55 = vpack.c.bf16 %v51, %v50
    %v56 = vld [vmem:[%s1] sm:$0xf]
    %v57 = vld [vmem:[%s1 + $0x4] sm:$0xf]
    %v58 = vld [vmem:[%s3] sm:$0x1]
    %v60 = vlaneseq
    %v61 = vshrl.u32 %v60, 7
    %v62 = vsub.s32 0, %v61
    %v63 = vrot.slane %v58, %v62
    %v67 = vunpack.c.l.b16 %v56
    %v68 = vunpack.c.l.b16 %v57
    %v69 = vpack.c.b16 %v68, %v67
    %vm71 = vcmask 130048
    %v73 = vsel %vm71, %v52, 0
    %v76 = vsel %vm71, %v53, 0
    %v79 = vsel %vm71, %v54, 0
    %v82 = vsel %vm71, %v55, 0
    %84 = vmatprep.subr.bf16.mxu0 0
    %85 = vmatpush1.bf16.msra.mxu0 0
    %86 = vmatprep.subr.bf16.mxu0 0
    %87 = vmatpush1.bf16.msra.mxu0 0
    %88 = vmatprep.subr.bf16.mxu0 0
    %89 = vmatpush1.bf16.msra.mxu0 0
    %90 = vmatprep.subr.bf16.mxu0 0
    %91 = vmatpush1.bf16.msra.mxu0 0
    %92 = vmatprep.subr.bf16.mxu0 0
    %93 = vmatpush1.bf16.msra.mxu0 0
    %94 = vmatprep.subr.bf16.mxu0 0
    %95 = vmatpush1.bf16.msra.mxu0 0
    %96 = vmatprep.subr.bf16.mxu0 0
    %97 = vmatpush1.bf16.msra.mxu0 0
    %98 = vmatprep.subr.bf16.mxu0 0
    %99 = vmatpush1.bf16.msra.mxu0 %v69
    %100 = vmatprep.subr.bf16.mxu0 0
    %101 = vmatpush2.bf16.msra.mxu0 0
    %102 = vmatprep.subr.bf16.mxu0 0
    %103 = vmatpush2.bf16.msra.mxu0 0
    %104 = vmatprep.subr.bf16.mxu0 0
    %105 = vmatpush2.bf16.msra.mxu0 0
    %106 = vmatprep.subr.bf16.mxu0 0
    %107 = vmatpush2.bf16.msra.mxu0 0
    %108 = vmatprep.subr.bf16.mxu0 0
    %109 = vmatpush2.bf16.msra.mxu0 0
    %110 = vmatprep.subr.bf16.mxu0 0
    %111 = vmatpush2.bf16.msra.mxu0 0
    %112 = vmatprep.subr.bf16.mxu0 0
    %113 = vmatpush2.bf16.msra.mxu0 0
    %114 = vmatprep.subr.bf16.mxu0 0
    %115 = vmatpush2.bf16.msra.mxu0 0
    %116 = vmatprep.mubr.bf16.mxu0 0
    %117 = vmatmul.mubr.bf16.gmra.mxu0 %v73
    %v118 = vpop.f32.mrf.mxu0
    %v119 = vadd.f32 %v63, %v118
    %v120 = vpop.f32.mrf.mxu0
    %v121 = vpop.f32.mrf.mxu0
    %v122 = vadd.f32 %v63, %v121
    %v123 = vpop.f32.mrf.mxu0
    %124 = vmatprep.mubr.bf16.mxu0 0
    %125 = vmatmul.mubr.bf16.gmra.mxu0 %v76
    %v126 = vpop.f32.mrf.mxu0
    %v127 = vadd.f32 %v63, %v126
    %v128 = vpop.f32.mrf.mxu0
    %v129 = vpop.f32.mrf.mxu0
    %v130 = vadd.f32 %v63, %v129
    %v131 = vpop.f32.mrf.mxu0
    %132 = vmatprep.mubr.bf16.mxu0 0
    %133 = vmatmul.mubr.bf16.gmra.mxu0 %v79
    %v134 = vpop.f32.mrf.mxu0
    %v135 = vadd.f32 %v63, %v134
    %v136 = vpop.f32.mrf.mxu0
    %v137 = vpop.f32.mrf.mxu0
    %v138 = vadd.f32 %v63, %v137
    %v139 = vpop.f32.mrf.mxu0
    %140 = vmatprep.mubr.bf16.mxu0 0
    %141 = vmatmul.mubr.bf16.gmra.mxu0 %v82
    %v142 = vpop.f32.mrf.mxu0
    %v143 = vadd.f32 %v63, %v142
    %v144 = vpop.f32.mrf.mxu0
    %v145 = vpop.f32.mrf.mxu0
    %v146 = vadd.f32 %v63, %v145
    %v147 = vpop.f32.mrf.mxu0
    %148 = vdwg.mxu0
    %149 = vst [vmem:[#allocation3] sm:$0xff] %v119
    %150 = vst [vmem:[#allocation3 + $0x8] sm:$0xff] %v122
    %151 = vst [vmem:[#allocation3 + $0x10] sm:$0xff] %v127
    %152 = vst [vmem:[#allocation3 + $0x18] sm:$0xff] %v130
    %153 = vst [vmem:[#allocation3 + $0x20] sm:$0xff] %v135
    %154 = vst [vmem:[#allocation3 + $0x28] sm:$0xff] %v138
    %155 = vst [vmem:[#allocation3 + $0x30] sm:$0xff] %v143
    %156 = vst [vmem:[#allocation3 + $0x38] sm:$0xff] %v146
    %v157 = vld [vmem:[%s2] sm:$0xf]
    %v158 = vld [vmem:[%s2 + $0x4] sm:$0xf]
    %v159 = vld [vmem:[%s2 + $0x8] sm:$0xf]
    %v160 = vld [vmem:[%s2 + $0xc] sm:$0xf]
    %v161 = vld [vmem:[%s2 + $0x10] sm:$0xf]
    %v162 = vld [vmem:[%s2 + $0x14] sm:$0xf]
    %v163 = vld [vmem:[%s2 + $0x18] sm:$0xf]
    %v164 = vld [vmem:[%s2 + $0x1c] sm:$0xf]
    %v165 = vld [vmem:[%s2 + $0x20] sm:$0xf]
    %v166 = vld [vmem:[%s2 + $0x24] sm:$0xf]
    %v167 = vld [vmem:[%s2 + $0x28] sm:$0xf]
    %v168 = vld [vmem:[%s2 + $0x2c] sm:$0xf]
    %v169 = vld [vmem:[%s2 + $0x30] sm:$0xf]
    %v170 = vld [vmem:[%s2 + $0x34] sm:$0xf]
    %v171 = vld [vmem:[%s2 + $0x38] sm:$0xf]
    %v172 = vld [vmem:[%s2 + $0x3c] sm:$0xf]
    %v173 = vld [vmem:[#allocation2] sm:$0xff]
    %v174 = vld [vmem:[#allocation3] sm:$0xff]
    %v175 = vpack.c.bf16 %v173, %v173
    %v192 = vunpack.c.l.b16 %v157
    %v193 = vunpack.c.l.b16 %v158
    %v194 = vunpack.c.l.b16 %v159
    %v195 = vunpack.c.l.b16 %v160
    %v196 = vunpack.c.l.b16 %v161
    %v197 = vunpack.c.l.b16 %v162
    %v198 = vunpack.c.l.b16 %v163
    %v199 = vunpack.c.l.b16 %v164
    %v200 = vunpack.c.l.b16 %v165
    %v201 = vunpack.c.l.b16 %v166
    %v202 = vunpack.c.l.b16 %v167
    %v203 = vunpack.c.l.b16 %v168
    %v204 = vunpack.c.l.b16 %v169
    %v205 = vunpack.c.l.b16 %v170
    %v206 = vunpack.c.l.b16 %v171
    %v207 = vunpack.c.l.b16 %v172
    %v208 = vpack.c.b16 %v193, %v192
    %v209 = vpack.c.b16 %v195, %v194
    %v210 = vpack.c.b16 %v197, %v196
    %v211 = vpack.c.b16 %v199, %v198
    %v212 = vpack.c.b16 %v201, %v200
    %v213 = vpack.c.b16 %v203, %v202
    %v214 = vpack.c.b16 %v205, %v204
    %v215 = vpack.c.b16 %v207, %v206
    %224 = vmatprep.subr.bf16.mxu0 0
    %225 = vmatpush1.bf16.msra.mxu0 %v215
    %226 = vmatprep.subr.bf16.mxu0 0
    %227 = vmatpush1.bf16.msra.mxu0 %v214
    %228 = vmatprep.subr.bf16.mxu0 0
    %229 = vmatpush1.bf16.msra.mxu0 %v213
    %230 = vmatprep.subr.bf16.mxu0 0
    %231 = vmatpush1.bf16.msra.mxu0 %v212
    %232 = vmatprep.subr.bf16.mxu0 0
    %233 = vmatpush1.bf16.msra.mxu0 %v211
    %234 = vmatprep.subr.bf16.mxu0 0
    %235 = vmatpush1.bf16.msra.mxu0 %v210
    %236 = vmatprep.subr.bf16.mxu0 0
    %237 = vmatpush1.bf16.msra.mxu0 %v209
    %238 = vmatprep.subr.bf16.mxu0 0
    %239 = vmatpush1.bf16.msra.mxu0 %v208
    %240 = vmatprep.subr.bf16.mxu0 0
    %241 = vmatpush2.bf16.msra.mxu0 0
    %242 = vmatprep.subr.bf16.mxu0 0
    %243 = vmatpush2.bf16.msra.mxu0 0
    %244 = vmatprep.subr.bf16.mxu0 0
    %245 = vmatpush2.bf16.msra.mxu0 0
    %246 = vmatprep.subr.bf16.mxu0 0
    %247 = vmatpush2.bf16.msra.mxu0 0
    %248 = vmatprep.subr.bf16.mxu0 0
    %249 = vmatpush2.bf16.msra.mxu0 0
    %250 = vmatprep.subr.bf16.mxu0 0
    %251 = vmatpush2.bf16.msra.mxu0 0
    %252 = vmatprep.subr.bf16.mxu0 0
    %253 = vmatpush2.bf16.msra.mxu0 0
    %254 = vmatprep.subr.bf16.mxu0 0
    %255 = vmatpush2.bf16.msra.mxu0 0
    %256 = vmatprep.mubr.bf16.mxu0 0
    %257 = vmatmul.mubr.bf16.gmra.mxu0 %v175
    %v258 = vpop.f32.mrf.mxu0
    %v259 = vadd.f32 0.0, %v258
    %v260 = vpop.f32.mrf.mxu0
    %v261 = vpop.f32.mrf.mxu0
    %v262 = vpop.f32.mrf.mxu0
    %263 = vdwg.mxu0
    %v264 = vadd.f32 %v174, %v259
    %v265 = vtanh.pop %v264
    %s266 = scalar_lea.vmem [#allocation3], 8
    %v267 = vld [vmem:[%s266] sm:$0xff]
    %v268 = vpack.c.bf16 %v265, %v265
    %269 = vmatprep.subr.bf16.mxu0 0
    %270 = vmatpush1.bf16.msra.mxu0 %v215
    %271 = vmatprep.subr.bf16.mxu0 0
    %272 = vmatpush1.bf16.msra.mxu0 %v214
    %273 = vmatprep.subr.bf16.mxu0 0
    %274 = vmatpush1.bf16.msra.mxu0 %v213
    %275 = vmatprep.subr.bf16.mxu0 0
    %276 = vmatpush1.bf16.msra.mxu0 %v212
    %277 = vmatprep.subr.bf16.mxu0 0
    %278 = vmatpush1.bf16.msra.mxu0 %v211
    %279 = vmatprep.subr.bf16.mxu0 0
    %280 = vmatpush1.bf16.msra.mxu0 %v210
    %281 = vmatprep.subr.bf16.mxu0 0
    %282 = vmatpush1.bf16.msra.mxu0 %v209
    %283 = vmatprep.subr.bf16.mxu0 0
    %284 = vmatpush1.bf16.msra.mxu0 %v208
    %285 = vmatprep.subr.bf16.mxu0 0
    %286 = vmatpush2.bf16.msra.mxu0 0
    %287 = vmatprep.subr.bf16.mxu0 0
    %288 = vmatpush2.bf16.msra.mxu0 0
    %289 = vmatprep.subr.bf16.mxu0 0
    %290 = vmatpush2.bf16.msra.mxu0 0
    %291 = vmatprep.subr.bf16.mxu0 0
    %292 = vmatpush2.bf16.msra.mxu0 0
    %293 = vmatprep.subr.bf16.mxu0 0
    %294 = vmatpush2.bf16.msra.mxu0 0
    %295 = vmatprep.subr.bf16.mxu0 0
    %296 = vmatpush2.bf16.msra.mxu0 0
    %297 = vmatprep.subr.bf16.mxu0 0
    %298 = vmatpush2.bf16.msra.mxu0 0
    %299 = vmatprep.subr.bf16.mxu0 0
    %300 = vmatpush2.bf16.msra.mxu0 0
    %301 = vmatprep.mubr.bf16.mxu0 0
    %302 = vmatmul.mubr.bf16.gmra.mxu0 %v268
    %v303 = vpop.f32.mrf.mxu0
    %v304 = vadd.f32 0.0, %v303
    %v305 = vpop.f32.mrf.mxu0
    %v306 = vpop.f32.mrf.mxu0
    %v307 = vpop.f32.mrf.mxu0
    %308 = vdwg.mxu0
    %v309 = vadd.f32 %v267, %v304
    %v310 = vtanh.pop %v309
    %s311 = scalar_lea.vmem [#allocation3], 16
    %v312 = vld [vmem:[%s311] sm:$0xff]
    %v313 = vpack.c.bf16 %v310, %v310
    %314 = vmatprep.subr.bf16.mxu0 0
    %315 = vmatpush1.bf16.msra.mxu0 %v215
    %316 = vmatprep.subr.bf16.mxu0 0
    %317 = vmatpush1.bf16.msra.mxu0 %v214
    %318 = vmatprep.subr.bf16.mxu0 0
    %319 = vmatpush1.bf16.msra.mxu0 %v213
    %320 = vmatprep.subr.bf16.mxu0 0
    %321 = vmatpush1.bf16.msra.mxu0 %v212
    %322 = vmatprep.subr.bf16.mxu0 0
    %323 = vmatpush1.bf16.msra.mxu0 %v211
    %324 = vmatprep.subr.bf16.mxu0 0
    %325 = vmatpush1.bf16.msra.mxu0 %v210
    %326 = vmatprep.subr.bf16.mxu0 0
    %327 = vmatpush1.bf16.msra.mxu0 %v209
    %328 = vmatprep.subr.bf16.mxu0 0
    %329 = vmatpush1.bf16.msra.mxu0 %v208
    %330 = vmatprep.subr.bf16.mxu0 0
    %331 = vmatpush2.bf16.msra.mxu0 0
    %332 = vmatprep.subr.bf16.mxu0 0
    %333 = vmatpush2.bf16.msra.mxu0 0
    %334 = vmatprep.subr.bf16.mxu0 0
    %335 = vmatpush2.bf16.msra.mxu0 0
    %336 = vmatprep.subr.bf16.mxu0 0
    %337 = vmatpush2.bf16.msra.mxu0 0
    %338 = vmatprep.subr.bf16.mxu0 0
    %339 = vmatpush2.bf16.msra.mxu0 0
    %340 = vmatprep.subr.bf16.mxu0 0
    %341 = vmatpush2.bf16.msra.mxu0 0
    %342 = vmatprep.subr.bf16.mxu0 0
    %343 = vmatpush2.bf16.msra.mxu0 0
    %344 = vmatprep.subr.bf16.mxu0 0
    %345 = vmatpush2.bf16.msra.mxu0 0
    %346 = vmatprep.mubr.bf16.mxu0 0
    %347 = vmatmul.mubr.bf16.gmra.mxu0 %v313
    %v348 = vpop.f32.mrf.mxu0
    %v349 = vadd.f32 0.0, %v348
    %v350 = vpop.f32.mrf.mxu0
    %v351 = vpop.f32.mrf.mxu0
    %v352 = vpop.f32.mrf.mxu0
    %353 = vdwg.mxu0
    %v354 = vadd.f32 %v312, %v349
    %v355 = vtanh.pop %v354
    %s356 = scalar_lea.vmem [#allocation3], 24
    %v357 = vld [vmem:[%s356] sm:$0xff]
    %v358 = vpack.c.bf16 %v355, %v355
    %359 = vmatprep.subr.bf16.mxu0 0
    %360 = vmatpush1.bf16.msra.mxu0 %v215
    %361 = vmatprep.subr.bf16.mxu0 0
    %362 = vmatpush1.bf16.msra.mxu0 %v214
    %363 = vmatprep.subr.bf16.mxu0 0
    %364 = vmatpush1.bf16.msra.mxu0 %v213
    %365 = vmatprep.subr.bf16.mxu0 0
    %366 = vmatpush1.bf16.msra.mxu0 %v212
    %367 = vmatprep.subr.bf16.mxu0 0
    %368 = vmatpush1.bf16.msra.mxu0 %v211
    %369 = vmatprep.subr.bf16.mxu0 0
    %370 = vmatpush1.bf16.msra.mxu0 %v210
    %371 = vmatprep.subr.bf16.mxu0 0
    %372 = vmatpush1.bf16.msra.mxu0 %v209
    %373 = vmatprep.subr.bf16.mxu0 0
    %374 = vmatpush1.bf16.msra.mxu0 %v208
    %375 = vmatprep.subr.bf16.mxu0 0
    %376 = vmatpush2.bf16.msra.mxu0 0
    %377 = vmatprep.subr.bf16.mxu0 0
    %378 = vmatpush2.bf16.msra.mxu0 0
    %379 = vmatprep.subr.bf16.mxu0 0
    %380 = vmatpush2.bf16.msra.mxu0 0
    %381 = vmatprep.subr.bf16.mxu0 0
    %382 = vmatpush2.bf16.msra.mxu0 0
    %383 = vmatprep.subr.bf16.mxu0 0
    %384 = vmatpush2.bf16.msra.mxu0 0
    %385 = vmatprep.subr.bf16.mxu0 0
    %386 = vmatpush2.bf16.msra.mxu0 0
    %387 = vmatprep.subr.bf16.mxu0 0
    %388 = vmatpush2.bf16.msra.mxu0 0
    %389 = vmatprep.subr.bf16.mxu0 0
    %390 = vmatpush2.bf16.msra.mxu0 0
    %391 = vmatprep.mubr.bf16.mxu0 0
    %392 = vmatmul.mubr.bf16.gmra.mxu0 %v358
    %v393 = vpop.f32.mrf.mxu0
    %v394 = vadd.f32 0.0, %v393
    %v395 = vpop.f32.mrf.mxu0
    %v396 = vpop.f32.mrf.mxu0
    %v397 = vpop.f32.mrf.mxu0
    %398 = vdwg.mxu0
    %v399 = vadd.f32 %v357, %v394
    %v400 = vtanh.pop %v399
    %s401 = scalar_lea.vmem [#allocation3], 32
    %v402 = vld [vmem:[%s401] sm:$0xff]
    %v403 = vpack.c.bf16 %v400, %v400
    %404 = vmatprep.subr.bf16.mxu0 0
    %405 = vmatpush1.bf16.msra.mxu0 %v215
    %406 = vmatprep.subr.bf16.mxu0 0
    %407 = vmatpush1.bf16.msra.mxu0 %v214
    %408 = vmatprep.subr.bf16.mxu0 0
    %409 = vmatpush1.bf16.msra.mxu0 %v213
    %410 = vmatprep.subr.bf16.mxu0 0
    %411 = vmatpush1.bf16.msra.mxu0 %v212
    %412 = vmatprep.subr.bf16.mxu0 0
    %413 = vmatpush1.bf16.msra.mxu0 %v211
    %414 = vmatprep.subr.bf16.mxu0 0
    %415 = vmatpush1.bf16.msra.mxu0 %v210
    %416 = vmatprep.subr.bf16.mxu0 0
    %417 = vmatpush1.bf16.msra.mxu0 %v209
    %418 = vmatprep.subr.bf16.mxu0 0
    %419 = vmatpush1.bf16.msra.mxu0 %v208
    %420 = vmatprep.subr.bf16.mxu0 0
    %421 = vmatpush2.bf16.msra.mxu0 0
    %422 = vmatprep.subr.bf16.mxu0 0
    %423 = vmatpush2.bf16.msra.mxu0 0
    %424 = vmatprep.subr.bf16.mxu0 0
    %425 = vmatpush2.bf16.msra.mxu0 0
    %426 = vmatprep.subr.bf16.mxu0 0
    %427 = vmatpush2.bf16.msra.mxu0 0
    %428 = vmatprep.subr.bf16.mxu0 0
    %429 = vmatpush2.bf16.msra.mxu0 0
    %430 = vmatprep.subr.bf16.mxu0 0
    %431 = vmatpush2.bf16.msra.mxu0 0
    %432 = vmatprep.subr.bf16.mxu0 0
    %433 = vmatpush2.bf16.msra.mxu0 0
    %434 = vmatprep.subr.bf16.mxu0 0
    %435 = vmatpush2.bf16.msra.mxu0 0
    %436 = vmatprep.mubr.bf16.mxu0 0
    %437 = vmatmul.mubr.bf16.gmra.mxu0 %v403
    %v438 = vpop.f32.mrf.mxu0
    %v439 = vadd.f32 0.0, %v438
    %v440 = vpop.f32.mrf.mxu0
    %v441 = vpop.f32.mrf.mxu0
    %v442 = vpop.f32.mrf.mxu0
    %443 = vdwg.mxu0
    %v444 = vadd.f32 %v402, %v439
    %v445 = vtanh.pop %v444
    %s446 = scalar_lea.vmem [#allocation3], 40
    %v447 = vld [vmem:[%s446] sm:$0xff]
    %v448 = vpack.c.bf16 %v445, %v445
    %449 = vmatprep.subr.bf16.mxu0 0
    %450 = vmatpush1.bf16.msra.mxu0 %v215
    %451 = vmatprep.subr.bf16.mxu0 0
    %452 = vmatpush1.bf16.msra.mxu0 %v214
    %453 = vmatprep.subr.bf16.mxu0 0
    %454 = vmatpush1.bf16.msra.mxu0 %v213
    %455 = vmatprep.subr.bf16.mxu0 0
    %456 = vmatpush1.bf16.msra.mxu0 %v212
    %457 = vmatprep.subr.bf16.mxu0 0
    %458 = vmatpush1.bf16.msra.mxu0 %v211
    %459 = vmatprep.subr.bf16.mxu0 0
    %460 = vmatpush1.bf16.msra.mxu0 %v210
    %461 = vmatprep.subr.bf16.mxu0 0
    %462 = vmatpush1.bf16.msra.mxu0 %v209
    %463 = vmatprep.subr.bf16.mxu0 0
    %464 = vmatpush1.bf16.msra.mxu0 %v208
    %465 = vmatprep.subr.bf16.mxu0 0
    %466 = vmatpush2.bf16.msra.mxu0 0
    %467 = vmatprep.subr.bf16.mxu0 0
    %468 = vmatpush2.bf16.msra.mxu0 0
    %469 = vmatprep.subr.bf16.mxu0 0
    %470 = vmatpush2.bf16.msra.mxu0 0
    %471 = vmatprep.subr.bf16.mxu0 0
    %472 = vmatpush2.bf16.msra.mxu0 0
    %473 = vmatprep.subr.bf16.mxu0 0
    %474 = vmatpush2.bf16.msra.mxu0 0
    %475 = vmatprep.subr.bf16.mxu0 0
    %476 = vmatpush2.bf16.msra.mxu0 0
    %477 = vmatprep.subr.bf16.mxu0 0
    %478 = vmatpush2.bf16.msra.mxu0 0
    %479 = vmatprep.subr.bf16.mxu0 0
    %480 = vmatpush2.bf16.msra.mxu0 0
    %481 = vmatprep.mubr.bf16.mxu0 0
    %482 = vmatmul.mubr.bf16.gmra.mxu0 %v448
    %v483 = vpop.f32.mrf.mxu0
    %v484 = vadd.f32 0.0, %v483
    %v485 = vpop.f32.mrf.mxu0
    %v486 = vpop.f32.mrf.mxu0
    %v487 = vpop.f32.mrf.mxu0
    %488 = vdwg.mxu0
    %v489 = vadd.f32 %v447, %v484
    %v490 = vtanh.pop %v489
    %s491 = scalar_lea.vmem [#allocation3], 48
    %v492 = vld [vmem:[%s491] sm:$0xff]
    %v493 = vpack.c.bf16 %v490, %v490
    %494 = vmatprep.subr.bf16.mxu0 0
    %495 = vmatpush1.bf16.msra.mxu0 %v215
    %496 = vmatprep.subr.bf16.mxu0 0
    %497 = vmatpush1.bf16.msra.mxu0 %v214
    %498 = vmatprep.subr.bf16.mxu0 0
    %499 = vmatpush1.bf16.msra.mxu0 %v213
    %500 = vmatprep.subr.bf16.mxu0 0
    %501 = vmatpush1.bf16.msra.mxu0 %v212
    %502 = vmatprep.subr.bf16.mxu0 0
    %503 = vmatpush1.bf16.msra.mxu0 %v211
    %504 = vmatprep.subr.bf16.mxu0 0
    %505 = vmatpush1.bf16.msra.mxu0 %v210
    %506 = vmatprep.subr.bf16.mxu0 0
    %507 = vmatpush1.bf16.msra.mxu0 %v209
    %508 = vmatprep.subr.bf16.mxu0 0
    %509 = vmatpush1.bf16.msra.mxu0 %v208
    %510 = vmatprep.subr.bf16.mxu0 0
    %511 = vmatpush2.bf16.msra.mxu0 0
    %512 = vmatprep.subr.bf16.mxu0 0
    %513 = vmatpush2.bf16.msra.mxu0 0
    %514 = vmatprep.subr.bf16.mxu0 0
    %515 = vmatpush2.bf16.msra.mxu0 0
    %516 = vmatprep.subr.bf16.mxu0 0
    %517 = vmatpush2.bf16.msra.mxu0 0
    %518 = vmatprep.subr.bf16.mxu0 0
    %519 = vmatpush2.bf16.msra.mxu0 0
    %520 = vmatprep.subr.bf16.mxu0 0
    %521 = vmatpush2.bf16.msra.mxu0 0
    %522 = vmatprep.subr.bf16.mxu0 0
    %523 = vmatpush2.bf16.msra.mxu0 0
    %524 = vmatprep.subr.bf16.mxu0 0
    %525 = vmatpush2.bf16.msra.mxu0 0
    %526 = vmatprep.mubr.bf16.mxu0 0
    %527 = vmatmul.mubr.bf16.gmra.mxu0 %v493
    %v528 = vpop.f32.mrf.mxu0
    %v529 = vadd.f32 0.0, %v528
    %v530 = vpop.f32.mrf.mxu0
    %v531 = vpop.f32.mrf.mxu0
    %v532 = vpop.f32.mrf.mxu0
    %533 = vdwg.mxu0
    %v534 = vadd.f32 %v492, %v529
    %v535 = vtanh.pop %v534
    %s536 = scalar_lea.vmem [#allocation3], 56
    %v537 = vld [vmem:[%s536] sm:$0xff]
    %v538 = vpack.c.bf16 %v535, %v535
    %539 = vmatprep.subr.bf16.mxu0 0
    %540 = vmatpush1.bf16.msra.mxu0 %v215
    %541 = vmatprep.subr.bf16.mxu0 0
    %542 = vmatpush1.bf16.msra.mxu0 %v214
    %543 = vmatprep.subr.bf16.mxu0 0
    %544 = vmatpush1.bf16.msra.mxu0 %v213
    %545 = vmatprep.subr.bf16.mxu0 0
    %546 = vmatpush1.bf16.msra.mxu0 %v212
    %547 = vmatprep.subr.bf16.mxu0 0
    %548 = vmatpush1.bf16.msra.mxu0 %v211
    %549 = vmatprep.subr.bf16.mxu0 0
    %550 = vmatpush1.bf16.msra.mxu0 %v210
    %551 = vmatprep.subr.bf16.mxu0 0
    %552 = vmatpush1.bf16.msra.mxu0 %v209
    %553 = vmatprep.subr.bf16.mxu0 0
    %554 = vmatpush1.bf16.msra.mxu0 %v208
    %555 = vmatprep.subr.bf16.mxu0 0
    %556 = vmatpush2.bf16.msra.mxu0 0
    %557 = vmatprep.subr.bf16.mxu0 0
    %558 = vmatpush2.bf16.msra.mxu0 0
    %559 = vmatprep.subr.bf16.mxu0 0
    %560 = vmatpush2.bf16.msra.mxu0 0
    %561 = vmatprep.subr.bf16.mxu0 0
    %562 = vmatpush2.bf16.msra.mxu0 0
    %563 = vmatprep.subr.bf16.mxu0 0
    %564 = vmatpush2.bf16.msra.mxu0 0
    %565 = vmatprep.subr.bf16.mxu0 0
    %566 = vmatpush2.bf16.msra.mxu0 0
    %567 = vmatprep.subr.bf16.mxu0 0
    %568 = vmatpush2.bf16.msra.mxu0 0
    %569 = vmatprep.subr.bf16.mxu0 0
    %570 = vmatpush2.bf16.msra.mxu0 0
    %571 = vmatprep.mubr.bf16.mxu0 0
    %572 = vmatmul.mubr.bf16.gmra.mxu0 %v538
    %v573 = vpop.f32.mrf.mxu0
    %v574 = vadd.f32 0.0, %v573
    %v575 = vpop.f32.mrf.mxu0
    %v576 = vpop.f32.mrf.mxu0
    %v577 = vpop.f32.mrf.mxu0
    %578 = vdwg.mxu0
    %v579 = vadd.f32 %v537, %v574
    %v580 = vtanh.pop %v579
    %581 = vst [vmem:[#allocation2] sm:$0xff] %v580
    // Predicated region
    $region34: #{tpu_custom_call.1} parent=1 // pred_check
      %p582 = pneg %p39
    $region35: #{tpu_custom_call.1} parent=1 // pred_check_branch
      %584 = sbr.rel (%p582) target = $region37
    $region36: #{tpu_custom_call.1} parent=1 // pred_region
      %v585 = vld [vmem:[#allocation2] sm:$0xff]
      %v586 = vpack.c.bf16 %v585, %v585
      %v587 = vld [vmem:[#allocation4] sm:$0xf]
      %v588 = vld [vmem:[#allocation4 + $0x4] sm:$0xf]
      %v589 = vld [vmem:[#allocation4 + $0x8] sm:$0xf]
      %v590 = vld [vmem:[#allocation4 + $0xc] sm:$0xf]
      %v591 = vld [vmem:[#allocation4 + $0x10] sm:$0xf]
      %v592 = vld [vmem:[#allocation4 + $0x14] sm:$0xf]
      %v593 = vld [vmem:[#allocation4 + $0x18] sm:$0xf]
      %v594 = vld [vmem:[#allocation4 + $0x1c] sm:$0xf]
      %v595 = vld [vmem:[#allocation4 + $0x20] sm:$0xf]
      %v596 = vld [vmem:[#allocation4 + $0x24] sm:$0xf]
      %v597 = vld [vmem:[#allocation4 + $0x28] sm:$0xf]
      %v598 = vld [vmem:[#allocation4 + $0x2c] sm:$0xf]
      %v599 = vld [vmem:[#allocation4 + $0x30] sm:$0xf]
      %v600 = vld [vmem:[#allocation4 + $0x34] sm:$0xf]
      %v601 = vld [vmem:[#allocation4 + $0x38] sm:$0xf]
      %v602 = vld [vmem:[#allocation4 + $0x3c] sm:$0xf]
      %v603 = vld [vmem:[%s5] sm:$0x1]
      %v605 = vlaneseq
      %v606 = vshrl.u32 %v605, 7
      %v607 = vsub.s32 0, %v606
      %v608 = vrot.slane %v603, %v607
      %v626 = vunpack.c.l.b16 %v587
      %v627 = vunpack.c.l.b16 %v588
      %v628 = vunpack.c.l.b16 %v589
      %v629 = vunpack.c.l.b16 %v590
      %v630 = vunpack.c.l.b16 %v591
      %v631 = vunpack.c.l.b16 %v592
      %v632 = vunpack.c.l.b16 %v593
      %v633 = vunpack.c.l.b16 %v594
      %v634 = vunpack.c.l.b16 %v595
      %v635 = vunpack.c.l.b16 %v596
      %v636 = vunpack.c.l.b16 %v597
      %v637 = vunpack.c.l.b16 %v598
      %v638 = vunpack.c.l.b16 %v599
      %v639 = vunpack.c.l.b16 %v600
      %v640 = vunpack.c.l.b16 %v601
      %v641 = vunpack.c.l.b16 %v602
      %v642 = vpack.c.b16 %v627, %v626
      %v643 = vpack.c.b16 %v629, %v628
      %v644 = vpack.c.b16 %v631, %v630
      %v645 = vpack.c.b16 %v633, %v632
      %v646 = vpack.c.b16 %v635, %v634
      %v647 = vpack.c.b16 %v637, %v636
      %v648 = vpack.c.b16 %v639, %v638
      %v649 = vpack.c.b16 %v641, %v640
      %658 = vmatprep.subr.bf16.mxu0 0
      %659 = vmatpush1.bf16.msra.mxu0 %v649
      %660 = vmatprep.subr.bf16.mxu0 0
      %661 = vmatpush1.bf16.msra.mxu0 %v648
      %662 = vmatprep.subr.bf16.mxu0 0
      %663 = vmatpush1.bf16.msra.mxu0 %v647
      %664 = vmatprep.subr.bf16.mxu0 0
      %665 = vmatpush1.bf16.msra.mxu0 %v646
      %666 = vmatprep.subr.bf16.mxu0 0
      %667 = vmatpush1.bf16.msra.mxu0 %v645
      %668 = vmatprep.subr.bf16.mxu0 0
      %669 = vmatpush1.bf16.msra.mxu0 %v644
      %670 = vmatprep.subr.bf16.mxu0 0
      %671 = vmatpush1.bf16.msra.mxu0 %v643
      %672 = vmatprep.subr.bf16.mxu0 0
      %673 = vmatpush1.bf16.msra.mxu0 %v642
      %674 = vmatprep.subr.bf16.mxu0 0
      %675 = vmatpush2.bf16.msra.mxu0 0
      %676 = vmatprep.subr.bf16.mxu0 0
      %677 = vmatpush2.bf16.msra.mxu0 0
      %678 = vmatprep.subr.bf16.mxu0 0
      %679 = vmatpush2.bf16.msra.mxu0 0
      %680 = vmatprep.subr.bf16.mxu0 0
      %681 = vmatpush2.bf16.msra.mxu0 0
      %682 = vmatprep.subr.bf16.mxu0 0
      %683 = vmatpush2.bf16.msra.mxu0 0
      %684 = vmatprep.subr.bf16.mxu0 0
      %685 = vmatpush2.bf16.msra.mxu0 0
      %686 = vmatprep.subr.bf16.mxu0 0
      %687 = vmatpush2.bf16.msra.mxu0 0
      %688 = vmatprep.subr.bf16.mxu0 0
      %689 = vmatpush2.bf16.msra.mxu0 0
      %690 = vmatprep.mubr.bf16.mxu0 0
      %691 = vmatmul.mubr.bf16.gmra.mxu0 %v586
      %v692 = vpop.f32.mrf.mxu0
      %v693 = vadd.f32 %v608, %v692
      %v694 = vpop.f32.mrf.mxu0
      %v695 = vpop.f32.mrf.mxu0
      %v696 = vpop.f32.mrf.mxu0
      %697 = vdwg.mxu0
      %698 = vst [vmem:[#allocation7] sm:$0xff] %v693
    $region37: #{tpu_custom_call.1} parent=1 // pred_fallthru
      _
    // Predicated region
    $region38: #{tpu_custom_call.1} parent=1 // pred_check
      _
    $region39: #{tpu_custom_call.1} parent=1 // pred_check_branch
      %700 = sbr.rel (0) target = $region41
    $region40: #{tpu_custom_call.1} parent=1 // pred_region
      %s702 = ssub.s32 128, 128
      %703 = vsyncadd [#allocation6], %s702
      %s705 = sshll.u32 [#allocation7], 4
      %s706 = int_to_ptr.vmem [resolvable:$true] %s705
      %708 = dma.vmem_to_hbm [thread:$0]  %s706, 128, %s6, [#allocation6]
    $region41: #{tpu_custom_call.1} parent=1 // pred_fallthru
      _
    // Predicated region
    $region42: #{tpu_custom_call.1} parent=1 // pred_check
      _
    $region43: #{tpu_custom_call.1} parent=1 // pred_check_branch
      %710 = sbr.rel (0) target = $region45
    $region44: #{tpu_custom_call.1} parent=1 // pred_region
      %711 = dma.done [#allocation6], 128
    $region45: #{tpu_custom_call.1} parent=1 // pred_fallthru
      _
    %712 = vsyncpa [#allocation5], 1
    %713 = vsyncpa [#allocation6], 1

// kernel: tpu_custom_call.1
$region0: #{tpu_custom_call.1}
  #allocation0 [shape = 'u32[]', space=smem, size = 0x4, offset = 0x4, fixed_abs, tag = 'smem constant byte address 0x4 - core index']
  #allocation1 [shape = 'u32[144,128]{1,0:T(1,128)}', space=vmem, size = 0x12000, scoped, tag = 'internal scratch']
  #allocation2 [shape = 'f32[8,128]{1,0:T(8,128)}', space=vmem, size = 0x1000, scoped, tag = 'scratch operand']
  #allocation3 [shape = 'f32[64,128]{1,0:T(8,128)}', space=vmem, size = 0x8000, scoped, tag = 'scratch operand']
  %s0 = inlined_call_operand.vmem [shape: f32[64,16], index: 0, kind: input, shape index: {}]
  %s1 = inlined_call_operand.vmem [shape: bf16[16,128], index: 1, kind: input, shape index: {}]
  %s2 = inlined_call_operand.vmem [shape: bf16[128,128], index: 2, kind: input, shape index: {}]
  %s3 = inlined_call_operand.vmem [shape: f32[1,128], index: 3, kind: input, shape index: {}]
  %s4 = inlined_call_operand.hbm [shape: bf16[128,128], index: 4, kind: input, shape index: {}]
  %s5 = inlined_call_operand.vmem [shape: f32[1,128], index: 5, kind: input, shape index: {}]
  %s6 = inlined_call_operand.hbm [shape: f32[8,128], index: 6, kind: output, shape index: {}]
  %s7 = sld [smem:[#allocation0]]
  $region46: #{tpu_custom_call.1} parent=0
    _
  %s9 = ssub.s32 1, %s7
  %s10 = scalar_select 0, %s9, %s7
  $region1: #{tpu_custom_call.1} parent=0
    #allocation4 [shape = 'u8[32768]{0}', space=vmem, size = 0x8000, scoped, tag = 'input window, operand 4, single buffered']
    #allocation5 [shape = 's32[1]{0}', space=sflag, size = 0x4, scoped, tag = 'scoped memory for tpu_custom_call.1']
    #allocation6 [shape = 's32[1]{0}', space=sflag, size = 0x4, scoped, tag = 'scoped memory for tpu_custom_call.1']
    #allocation7 [shape = 'u8[4096]{0}', space=vmem, size = 0x1000, scoped, tag = 'output window, operand 0, single buffered']
    %11 = vsyncpa [#allocation5], 0
    %12 = vsyncpa [#allocation6], 0
    // Predicated region
    $region2: #{tpu_custom_call.1} parent=1 // pred_check
      _
    $region3: #{tpu_custom_call.1} parent=1 // pred_check_branch
      %14 = sbr.rel (0) target = $region5
    $region4: #{tpu_custom_call.1} parent=1 // pred_region
      _
    $region5: #{tpu_custom_call.1} parent=1 // pred_fallthru
      _
    // Predicated region
    $region6: #{tpu_custom_call.1} parent=1 // pred_check
      _
    $region7: #{tpu_custom_call.1} parent=1 // pred_check_branch
      %16 = sbr.rel (0) target = $region9
    $region8: #{tpu_custom_call.1} parent=1 // pred_region
      _
    $region9: #{tpu_custom_call.1} parent=1 // pred_fallthru
      _
    // Predicated region
    $region10: #{tpu_custom_call.1} parent=1 // pred_check
      _
    $region11: #{tpu_custom_call.1} parent=1 // pred_check_branch
      %18 = sbr.rel (0) target = $region13
    $region12: #{tpu_custom_call.1} parent=1 // pred_region
      _
    $region13: #{tpu_custom_call.1} parent=1 // pred_fallthru
      _
    // Predicated region
    $region14: #{tpu_custom_call.1} parent=1 // pred_check
      _
    $region15: #{tpu_custom_call.1} parent=1 // pred_check_branch
      %20 = sbr.rel (0) target = $region17
    $region16: #{tpu_custom_call.1} parent=1 // pred_region
      _
    $region17: #{tpu_custom_call.1} parent=1 // pred_fallthru
      _
    // Predicated region
    $region18: #{tpu_custom_call.1} parent=1 // pred_check
      _
    $region19: #{tpu_custom_call.1} parent=1 // pred_check_branch
      %22 = sbr.rel (0) target = $region21
    $region20: #{tpu_custom_call.1} parent=1 // pred_region
      %s24 = ssub.s32 1024, 1024
      %25 = vsyncadd [#allocation5], %s24
      %s26 = sshll.u32 [#allocation4], 4
      %s27 = int_to_ptr.vmem [resolvable:$true] %s26
      %32 = dma.hbm_to_vmem [thread:$0]  %s4, 1024, %s27, [#allocation5], 64, 64, 4
    $region21: #{tpu_custom_call.1} parent=1 // pred_fallthru
      _
    // Predicated region
    $region22: #{tpu_custom_call.1} parent=1 // pred_check
      _
    $region23: #{tpu_custom_call.1} parent=1 // pred_check_branch
      %34 = sbr.rel (0) target = $region25
    $region24: #{tpu_custom_call.1} parent=1 // pred_region
      _
    $region25: #{tpu_custom_call.1} parent=1 // pred_fallthru
      _
    // Predicated region
    $region26: #{tpu_custom_call.1} parent=1 // pred_check
      _
    $region27: #{tpu_custom_call.1} parent=1 // pred_check_branch
      %36 = sbr.rel (0) target = $region29
    $region28: #{tpu_custom_call.1} parent=1 // pred_region
      %37 = dma.done [#allocation5], 1024
    $region29: #{tpu_custom_call.1} parent=1 // pred_fallthru
      _
    %p39 = scmp.eq.s32.totalorder 0, 0
    // Predicated region
    $region30: #{tpu_custom_call.1} parent=1 // pred_check
      %p40 = pneg %p39
    $region31: #{tpu_custom_call.1} parent=1 // pred_check_branch
      %42 = sbr.rel (%p40) target = $region33
    $region32: #{tpu_custom_call.1} parent=1 // pred_region
      %43 = vst [vmem:[#allocation2] sm:$0xff] 0.0
    $region33: #{tpu_custom_call.1} parent=1 // pred_fallthru
      _
    %v44 = vld [vmem:[%s0] sm:$0xff]
    %v45 = vld [vmem:[%s0 + $0x8] sm:$0xff]
    %v46 = vld [vmem:[%s0 + $0x10] sm:$0xff]
    %v47 = vld [vmem:[%s0 + $0x18] sm:$0xff]
    %v48 = vld [vmem:[%s0 + $0x20] sm:$0xff]
    %v49 = vld [vmem:[%s0 + $0x28] sm:$0xff]
    %v50 = vld [vmem:[%s0 + $0x30] sm:$0xff]
    %v51 = vld [vmem:[%s0 + $0x38] sm:$0xff]
    %v52 = vpack.c.bf16 %v45, %v44
    %v53 = vpack.c.bf16 %v47, %v46
    %v54 = vpack.c.bf16 %v49, %v48
    %v55 = vpack.c.bf16 %v51, %v50
    %v56 = vld [vmem:[%s1] sm:$0xf]
    %v57 = vld [vmem:[%s1 + $0x4] sm:$0xf]
    %v58 = vld [vmem:[%s3] sm:$0x1]
    %v60 = vlaneseq
    %v61 = vshrl.u32 %v60, 7
    %v62 = vsub.s32 0, %v61
    %v63 = vrot.slane %v58, %v62
    %v67 = vunpack.c.l.b16 %v56
    %v68 = vunpack.c.l.b16 %v57
    %v69 = vpack.c.b16 %v68, %v67
    %vm71 = vcmask 130048
    %v73 = vsel %vm71, %v52, 0
    %v76 = vsel %vm71, %v53, 0
    %v79 = vsel %vm71, %v54, 0
    %v82 = vsel %vm71, %v55, 0
    %84 = vmatprep.subr.bf16.mxu0 0
    %85 = vmatpush1.bf16.msra.mxu0 0
    %86 = vmatprep.subr.bf16.mxu0 0
    %87 = vmatpush1.bf16.msra.mxu0 0
    %88 = vmatprep.subr.bf16.mxu0 0
    %89 = vmatpush1.bf16.msra.mxu0 0
    %90 = vmatprep.subr.bf16.mxu0 0
    %91 = vmatpush1.bf16.msra.mxu0 0
    %92 = vmatprep.subr.bf16.mxu0 0
    %93 = vmatpush1.bf16.msra.mxu0 0
    %94 = vmatprep.subr.bf16.mxu0 0
    %95 = vmatpush1.bf16.msra.mxu0 0
    %96 = vmatprep.subr.bf16.mxu0 0
    %97 = vmatpush1.bf16.msra.mxu0 0
    %98 = vmatprep.subr.bf16.mxu0 0
    %99 = vmatpush1.bf16.msra.mxu0 %v69
    %100 = vmatprep.subr.bf16.mxu0 0
    %101 = vmatpush2.bf16.msra.mxu0 0
    %102 = vmatprep.subr.bf16.mxu0 0
    %103 = vmatpush2.bf16.msra.mxu0 0
    %104 = vmatprep.subr.bf16.mxu0 0
    %105 = vmatpush2.bf16.msra.mxu0 0
    %106 = vmatprep.subr.bf16.mxu0 0
    %107 = vmatpush2.bf16.msra.mxu0 0
    %108 = vmatprep.subr.bf16.mxu0 0
    %109 = vmatpush2.bf16.msra.mxu0 0
    %110 = vmatprep.subr.bf16.mxu0 0
    %111 = vmatpush2.bf16.msra.mxu0 0
    %112 = vmatprep.subr.bf16.mxu0 0
    %113 = vmatpush2.bf16.msra.mxu0 0
    %114 = vmatprep.subr.bf16.mxu0 0
    %115 = vmatpush2.bf16.msra.mxu0 0
    %116 = vmatprep.mubr.bf16.mxu0 0
    %117 = vmatmul.mubr.bf16.gmra.mxu0 %v73
    %v118 = vpop.f32.mrf.mxu0
    %v119 = vadd.f32 %v63, %v118
    %v120 = vpop.f32.mrf.mxu0
    %v121 = vpop.f32.mrf.mxu0
    %v122 = vadd.f32 %v63, %v121
    %v123 = vpop.f32.mrf.mxu0
    %124 = vmatprep.mubr.bf16.mxu0 0
    %125 = vmatmul.mubr.bf16.gmra.mxu0 %v76
    %v126 = vpop.f32.mrf.mxu0
    %v127 = vadd.f32 %v63, %v126
    %v128 = vpop.f32.mrf.mxu0
    %v129 = vpop.f32.mrf.mxu0
    %v130 = vadd.f32 %v63, %v129
    %v131 = vpop.f32.mrf.mxu0
    %132 = vmatprep.mubr.bf16.mxu0 0
    %133 = vmatmul.mubr.bf16.gmra.mxu0 %v79
    %v134 = vpop.f32.mrf.mxu0
    %v135 = vadd.f32 %v63, %v134
    %v136 = vpop.f32.mrf.mxu0
    %v137 = vpop.f32.mrf.mxu0
    %v138 = vadd.f32 %v63, %v137
    %v139 = vpop.f32.mrf.mxu0
    %140 = vmatprep.mubr.bf16.mxu0 0
    %141 = vmatmul.mubr.bf16.gmra.mxu0 %v82
    %v142 = vpop.f32.mrf.mxu0
    %v143 = vadd.f32 %v63, %v142
    %v144 = vpop.f32.mrf.mxu0
    %v145 = vpop.f32.mrf.mxu0
    %v146 = vadd.f32 %v63, %v145
    %v147 = vpop.f32.mrf.mxu0
    %148 = vdwg.mxu0
    %149 = vst [vmem:[#allocation3] sm:$0xff] %v119
    %150 = vst [vmem:[#allocation3 + $0x8] sm:$0xff] %v122
    %151 = vst [vmem:[#allocation3 + $0x10] sm:$0xff] %v127
    %152 = vst [vmem:[#allocation3 + $0x18] sm:$0xff] %v130
    %153 = vst [vmem:[#allocation3 + $0x20] sm:$0xff] %v135
    %154 = vst [vmem:[#allocation3 + $0x28] sm:$0xff] %v138
    %155 = vst [vmem:[#allocation3 + $0x30] sm:$0xff] %v143
    %156 = vst [vmem:[#allocation3 + $0x38] sm:$0xff] %v146
    %v157 = vld [vmem:[%s2] sm:$0xf]
    %v158 = vld [vmem:[%s2 + $0x4] sm:$0xf]
    %v159 = vld [vmem:[%s2 + $0x8] sm:$0xf]
    %v160 = vld [vmem:[%s2 + $0xc] sm:$0xf]
    %v161 = vld [vmem:[%s2 + $0x10] sm:$0xf]
    %v162 = vld [vmem:[%s2 + $0x14] sm:$0xf]
    %v163 = vld [vmem:[%s2 + $0x18] sm:$0xf]
    %v164 = vld [vmem:[%s2 + $0x1c] sm:$0xf]
    %v165 = vld [vmem:[%s2 + $0x20] sm:$0xf]
    %v166 = vld [vmem:[%s2 + $0x24] sm:$0xf]
    %v167 = vld [vmem:[%s2 + $0x28] sm:$0xf]
    %v168 = vld [vmem:[%s2 + $0x2c] sm:$0xf]
    %v169 = vld [vmem:[%s2 + $0x30] sm:$0xf]
    %v170 = vld [vmem:[%s2 + $0x34] sm:$0xf]
    %v171 = vld [vmem:[%s2 + $0x38] sm:$0xf]
    %v172 = vld [vmem:[%s2 + $0x3c] sm:$0xf]
    %v173 = vld [vmem:[#allocation2] sm:$0xff]
    %v174 = vld [vmem:[#allocation3] sm:$0xff]
    %v175 = vpack.c.bf16 %v173, %v173
    %v192 = vunpack.c.l.b16 %v157
    %v193 = vunpack.c.l.b16 %v158
    %v194 = vunpack.c.l.b16 %v159
    %v195 = vunpack.c.l.b16 %v160
    %v196 = vunpack.c.l.b16 %v161
    %v197 = vunpack.c.l.b16 %v162
    %v198 = vunpack.c.l.b16 %v163
    %v199 = vunpack.c.l.b16 %v164
    %v200 = vunpack.c.l.b16 %v165
    %v201 = vunpack.c.l.b16 %v166
    %v202 = vunpack.c.l.b16 %v167
    %v203 = vunpack.c.l.b16 %v168
    %v204 = vunpack.c.l.b16 %v169
    %v205 = vunpack.c.l.b16 %v170
    %v206 = vunpack.c.l.b16 %v171
    %v207 = vunpack.c.l.b16 %v172
    %v208 = vpack.c.b16 %v193, %v192
    %v209 = vpack.c.b16 %v195, %v194
    %v210 = vpack.c.b16 %v197, %v196
    %v211 = vpack.c.b16 %v199, %v198
    %v212 = vpack.c.b16 %v201, %v200
    %v213 = vpack.c.b16 %v203, %v202
    %v214 = vpack.c.b16 %v205, %v204
    %v215 = vpack.c.b16 %v207, %v206
    %224 = vmatprep.subr.bf16.mxu0 0
    %225 = vmatpush1.bf16.msra.mxu0 %v215
    %226 = vmatprep.subr.bf16.mxu0 0
    %227 = vmatpush1.bf16.msra.mxu0 %v214
    %228 = vmatprep.subr.bf16.mxu0 0
    %229 = vmatpush1.bf16.msra.mxu0 %v213
    %230 = vmatprep.subr.bf16.mxu0 0
    %231 = vmatpush1.bf16.msra.mxu0 %v212
    %232 = vmatprep.subr.bf16.mxu0 0
    %233 = vmatpush1.bf16.msra.mxu0 %v211
    %234 = vmatprep.subr.bf16.mxu0 0
    %235 = vmatpush1.bf16.msra.mxu0 %v210
    %236 = vmatprep.subr.bf16.mxu0 0
    %237 = vmatpush1.bf16.msra.mxu0 %v209
    %238 = vmatprep.subr.bf16.mxu0 0
    %239 = vmatpush1.bf16.msra.mxu0 %v208
    %240 = vmatprep.subr.bf16.mxu0 0
    %241 = vmatpush2.bf16.msra.mxu0 0
    %242 = vmatprep.subr.bf16.mxu0 0
    %243 = vmatpush2.bf16.msra.mxu0 0
    %244 = vmatprep.subr.bf16.mxu0 0
    %245 = vmatpush2.bf16.msra.mxu0 0
    %246 = vmatprep.subr.bf16.mxu0 0
    %247 = vmatpush2.bf16.msra.mxu0 0
    %248 = vmatprep.subr.bf16.mxu0 0
    %249 = vmatpush2.bf16.msra.mxu0 0
    %250 = vmatprep.subr.bf16.mxu0 0
    %251 = vmatpush2.bf16.msra.mxu0 0
    %252 = vmatprep.subr.bf16.mxu0 0
    %253 = vmatpush2.bf16.msra.mxu0 0
    %254 = vmatprep.subr.bf16.mxu0 0
    %255 = vmatpush2.bf16.msra.mxu0 0
    %256 = vmatprep.mubr.bf16.mxu0 0
    %257 = vmatmul.mubr.bf16.gmra.mxu0 %v175
    %v258 = vpop.f32.mrf.mxu0
    %v259 = vadd.f32 0.0, %v258
    %v260 = vpop.f32.mrf.mxu0
    %v261 = vpop.f32.mrf.mxu0
    %v262 = vpop.f32.mrf.mxu0
    %263 = vdwg.mxu0
    %v264 = vadd.f32 %v174, %v259
    %v265 = vtanh.pop %v264
    %s266 = scalar_lea.vmem [#allocation3], 8
    %v267 = vld [vmem:[%s266] sm:$0xff]
    %v268 = vpack.c.bf16 %v265, %v265
    %269 = vmatprep.subr.bf16.mxu0 0
    %270 = vmatpush1.bf16.msra.mxu0 %v215
    %271 = vmatprep.subr.bf16.mxu0 0
    %272 = vmatpush1.bf16.msra.mxu0 %v214
    %273 = vmatprep.subr.bf16.mxu0 0
    %274 = vmatpush1.bf16.msra.mxu0 %v213
    %275 = vmatprep.subr.bf16.mxu0 0
    %276 = vmatpush1.bf16.msra.mxu0 %v212
    %277 = vmatprep.subr.bf16.mxu0 0
    %278 = vmatpush1.bf16.msra.mxu0 %v211
    %279 = vmatprep.subr.bf16.mxu0 0
    %280 = vmatpush1.bf16.msra.mxu0 %v210
    %281 = vmatprep.subr.bf16.mxu0 0
    %282 = vmatpush1.bf16.msra.mxu0 %v209
    %283 = vmatprep.subr.bf16.mxu0 0
    %284 = vmatpush1.bf16.msra.mxu0 %v208
    %285 = vmatprep.subr.bf16.mxu0 0
    %286 = vmatpush2.bf16.msra.mxu0 0
    %287 = vmatprep.subr.bf16.mxu0 0
    %288 = vmatpush2.bf16.msra.mxu0 0
    %289 = vmatprep.subr.bf16.mxu0 0
    %290 = vmatpush2.bf16.msra.mxu0 0
    %291 = vmatprep.subr.bf16.mxu0 0
    %292 = vmatpush2.bf16.msra.mxu0 0
    %293 = vmatprep.subr.bf16.mxu0 0
    %294 = vmatpush2.bf16.msra.mxu0 0
    %295 = vmatprep.subr.bf16.mxu0 0
    %296 = vmatpush2.bf16.msra.mxu0 0
    %297 = vmatprep.subr.bf16.mxu0 0
    %298 = vmatpush2.bf16.msra.mxu0 0
    %299 = vmatprep.subr.bf16.mxu0 0
    %300 = vmatpush2.bf16.msra.mxu0 0
    %301 = vmatprep.mubr.bf16.mxu0 0
    %302 = vmatmul.mubr.bf16.gmra.mxu0 %v268
    %v303 = vpop.f32.mrf.mxu0
    %v304 = vadd.f32 0.0, %v303
    %v305 = vpop.f32.mrf.mxu0
    %v306 = vpop.f32.mrf.mxu0
    %v307 = vpop.f32.mrf.mxu0
    %308 = vdwg.mxu0
    %v309 = vadd.f32 %v267, %v304
    %v310 = vtanh.pop %v309
    %s311 = scalar_lea.vmem [#allocation3], 16
    %v312 = vld [vmem:[%s311] sm:$0xff]
    %v313 = vpack.c.bf16 %v310, %v310
    %314 = vmatprep.subr.bf16.mxu0 0
    %315 = vmatpush1.bf16.msra.mxu0 %v215
    %316 = vmatprep.subr.bf16.mxu0 0
    %317 = vmatpush1.bf16.msra.mxu0 %v214
    %318 = vmatprep.subr.bf16.mxu0 0
    %319 = vmatpush1.bf16.msra.mxu0 %v213
    %320 = vmatprep.subr.bf16.mxu0 0
    %321 = vmatpush1.bf16.msra.mxu0 %v212
    %322 = vmatprep.subr.bf16.mxu0 0
    %323 = vmatpush1.bf16.msra.mxu0 %v211
    %324 = vmatprep.subr.bf16.mxu0 0
    %325 = vmatpush1.bf16.msra.mxu0 %v210
    %326 = vmatprep.subr.bf16.mxu0 0
    %327 = vmatpush1.bf16.msra.mxu0 %v209
    %328 = vmatprep.subr.bf16.mxu0 0
    %329 = vmatpush1.bf16.msra.mxu0 %v208
    %330 = vmatprep.subr.bf16.mxu0 0
    %331 = vmatpush2.bf16.msra.mxu0 0
    %332 = vmatprep.subr.bf16.mxu0 0
    %333 = vmatpush2.bf16.msra.mxu0 0
    %334 = vmatprep.subr.bf16.mxu0 0
    %335 = vmatpush2.bf16.msra.mxu0 0
    %336 = vmatprep.subr.bf16.mxu0 0
    %337 = vmatpush2.bf16.msra.mxu0 0
    %338 = vmatprep.subr.bf16.mxu0 0
    %339 = vmatpush2.bf16.msra.mxu0 0
    %340 = vmatprep.subr.bf16.mxu0 0
    %341 = vmatpush2.bf16.msra.mxu0 0
    %342 = vmatprep.subr.bf16.mxu0 0
    %343 = vmatpush2.bf16.msra.mxu0 0
    %344 = vmatprep.subr.bf16.mxu0 0
    %345 = vmatpush2.bf16.msra.mxu0 0
    %346 = vmatprep.mubr.bf16.mxu0 0
    %347 = vmatmul.mubr.bf16.gmra.mxu0 %v313
    %v348 = vpop.f32.mrf.mxu0
    %v349 = vadd.f32 0.0, %v348
    %v350 = vpop.f32.mrf.mxu0
    %v351 = vpop.f32.mrf.mxu0
    %v352 = vpop.f32.mrf.mxu0
    %353 = vdwg.mxu0
    %v354 = vadd.f32 %v312, %v349
    %v355 = vtanh.pop %v354
    %s356 = scalar_lea.vmem [#allocation3], 24
    %v357 = vld [vmem:[%s356] sm:$0xff]
    %v358 = vpack.c.bf16 %v355, %v355
    %359 = vmatprep.subr.bf16.mxu0 0
    %360 = vmatpush1.bf16.msra.mxu0 %v215
    %361 = vmatprep.subr.bf16.mxu0 0
    %362 = vmatpush1.bf16.msra.mxu0 %v214
    %363 = vmatprep.subr.bf16.mxu0 0
    %364 = vmatpush1.bf16.msra.mxu0 %v213
    %365 = vmatprep.subr.bf16.mxu0 0
    %366 = vmatpush1.bf16.msra.mxu0 %v212
    %367 = vmatprep.subr.bf16.mxu0 0
    %368 = vmatpush1.bf16.msra.mxu0 %v211
    %369 = vmatprep.subr.bf16.mxu0 0
    %370 = vmatpush1.bf16.msra.mxu0 %v210
    %371 = vmatprep.subr.bf16.mxu0 0
    %372 = vmatpush1.bf16.msra.mxu0 %v209
    %373 = vmatprep.subr.bf16.mxu0 0
    %374 = vmatpush1.bf16.msra.mxu0 %v208
    %375 = vmatprep.subr.bf16.mxu0 0
    %376 = vmatpush2.bf16.msra.mxu0 0
    %377 = vmatprep.subr.bf16.mxu0 0
    %378 = vmatpush2.bf16.msra.mxu0 0
    %379 = vmatprep.subr.bf16.mxu0 0
    %380 = vmatpush2.bf16.msra.mxu0 0
    %381 = vmatprep.subr.bf16.mxu0 0
    %382 = vmatpush2.bf16.msra.mxu0 0
    %383 = vmatprep.subr.bf16.mxu0 0
    %384 = vmatpush2.bf16.msra.mxu0 0
    %385 = vmatprep.subr.bf16.mxu0 0
    %386 = vmatpush2.bf16.msra.mxu0 0
    %387 = vmatprep.subr.bf16.mxu0 0
    %388 = vmatpush2.bf16.msra.mxu0 0
    %389 = vmatprep.subr.bf16.mxu0 0
    %390 = vmatpush2.bf16.msra.mxu0 0
    %391 = vmatprep.mubr.bf16.mxu0 0
    %392 = vmatmul.mubr.bf16.gmra.mxu0 %v358
    %v393 = vpop.f32.mrf.mxu0
    %v394 = vadd.f32 0.0, %v393
    %v395 = vpop.f32.mrf.mxu0
    %v396 = vpop.f32.mrf.mxu0
    %v397 = vpop.f32.mrf.mxu0
    %398 = vdwg.mxu0
    %v399 = vadd.f32 %v357, %v394
    %v400 = vtanh.pop %v399
    %s401 = scalar_lea.vmem [#allocation3], 32
    %v402 = vld [vmem:[%s401] sm:$0xff]
    %v403 = vpack.c.bf16 %v400, %v400
    %404 = vmatprep.subr.bf16.mxu0 0
    %405 = vmatpush1.bf16.msra.mxu0 %v215
    %406 = vmatprep.subr.bf16.mxu0 0
    %407 = vmatpush1.bf16.msra.mxu0 %v214
    %408 = vmatprep.subr.bf16.mxu0 0
    %409 = vmatpush1.bf16.msra.mxu0 %v213
    %410 = vmatprep.subr.bf16.mxu0 0
    %411 = vmatpush1.bf16.msra.mxu0 %v212
    %412 = vmatprep.subr.bf16.mxu0 0
    %413 = vmatpush1.bf16.msra.mxu0 %v211
    %414 = vmatprep.subr.bf16.mxu0 0
    %415 = vmatpush1.bf16.msra.mxu0 %v210
    %416 = vmatprep.subr.bf16.mxu0 0
    %417 = vmatpush1.bf16.msra.mxu0 %v209
    %418 = vmatprep.subr.bf16.mxu0 0
    %419 = vmatpush1.bf16.msra.mxu0 %v208
    %420 = vmatprep.subr.bf16.mxu0 0
    %421 = vmatpush2.bf16.msra.mxu0 0
    %422 = vmatprep.subr.bf16.mxu0 0
    %423 = vmatpush2.bf16.msra.mxu0 0
    %424 = vmatprep.subr.bf16.mxu0 0
    %425 = vmatpush2.bf16.msra.mxu0 0
    %426 = vmatprep.subr.bf16.mxu0 0
    %427 = vmatpush2.bf16.msra.mxu0 0
    %428 = vmatprep.subr.bf16.mxu0 0
    %429 = vmatpush2.bf16.msra.mxu0 0
    %430 = vmatprep.subr.bf16.mxu0 0
    %431 = vmatpush2.bf16.msra.mxu0 0
    %432 = vmatprep.subr.bf16.mxu0 0
    %433 = vmatpush2.bf16.msra.mxu0 0
    %434 = vmatprep.subr.bf16.mxu0 0
    %435 = vmatpush2.bf16.msra.mxu0 0
    %436 = vmatprep.mubr.bf16.mxu0 0
    %437 = vmatmul.mubr.bf16.gmra.mxu0 %v403
    %v438 = vpop.f32.mrf.mxu0
    %v439 = vadd.f32 0.0, %v438
    %v440 = vpop.f32.mrf.mxu0
    %v441 = vpop.f32.mrf.mxu0
    %v442 = vpop.f32.mrf.mxu0
    %443 = vdwg.mxu0
    %v444 = vadd.f32 %v402, %v439
    %v445 = vtanh.pop %v444
    %s446 = scalar_lea.vmem [#allocation3], 40
    %v447 = vld [vmem:[%s446] sm:$0xff]
    %v448 = vpack.c.bf16 %v445, %v445
    %449 = vmatprep.subr.bf16.mxu0 0
    %450 = vmatpush1.bf16.msra.mxu0 %v215
    %451 = vmatprep.subr.bf16.mxu0 0
    %452 = vmatpush1.bf16.msra.mxu0 %v214
    %453 = vmatprep.subr.bf16.mxu0 0
    %454 = vmatpush1.bf16.msra.mxu0 %v213
    %455 = vmatprep.subr.bf16.mxu0 0
    %456 = vmatpush1.bf16.msra.mxu0 %v212
    %457 = vmatprep.subr.bf16.mxu0 0
    %458 = vmatpush1.bf16.msra.mxu0 %v211
    %459 = vmatprep.subr.bf16.mxu0 0
    %460 = vmatpush1.bf16.msra.mxu0 %v210
    %461 = vmatprep.subr.bf16.mxu0 0
    %462 = vmatpush1.bf16.msra.mxu0 %v209
    %463 = vmatprep.subr.bf16.mxu0 0
    %464 = vmatpush1.bf16.msra.mxu0 %v208
    %465 = vmatprep.subr.bf16.mxu0 0
    %466 = vmatpush2.bf16.msra.mxu0 0
    %467 = vmatprep.subr.bf16.mxu0 0
    %468 = vmatpush2.bf16.msra.mxu0 0
    %469 = vmatprep.subr.bf16.mxu0 0
    %470 = vmatpush2.bf16.msra.mxu0 0
    %471 = vmatprep.subr.bf16.mxu0 0
    %472 = vmatpush2.bf16.msra.mxu0 0
    %473 = vmatprep.subr.bf16.mxu0 0
    %474 = vmatpush2.bf16.msra.mxu0 0
    %475 = vmatprep.subr.bf16.mxu0 0
    %476 = vmatpush2.bf16.msra.mxu0 0
    %477 = vmatprep.subr.bf16.mxu0 0
    %478 = vmatpush2.bf16.msra.mxu0 0
    %479 = vmatprep.subr.bf16.mxu0 0
    %480 = vmatpush2.bf16.msra.mxu0 0
    %481 = vmatprep.mubr.bf16.mxu0 0
    %482 = vmatmul.mubr.bf16.gmra.mxu0 %v448
    %v483 = vpop.f32.mrf.mxu0
    %v484 = vadd.f32 0.0, %v483
    %v485 = vpop.f32.mrf.mxu0
    %v486 = vpop.f32.mrf.mxu0
    %v487 = vpop.f32.mrf.mxu0
    %488 = vdwg.mxu0
    %v489 = vadd.f32 %v447, %v484
    %v490 = vtanh.pop %v489
    %s491 = scalar_lea.vmem [#allocation3], 48
    %v492 = vld [vmem:[%s491] sm:$0xff]
    %v493 = vpack.c.bf16 %v490, %v490
    %494 = vmatprep.subr.bf16.mxu0 0
    %495 = vmatpush1.bf16.msra.mxu0 %v215
    %496 = vmatprep.subr.bf16.mxu0 0
    %497 = vmatpush1.bf16.msra.mxu0 %v214
    %498 = vmatprep.subr.bf16.mxu0 0
    %499 = vmatpush1.bf16.msra.mxu0 %v213
    %500 = vmatprep.subr.bf16.mxu0 0
    %501 = vmatpush1.bf16.msra.mxu0 %v212
    %502 = vmatprep.subr.bf16.mxu0 0
    %503 = vmatpush1.bf16.msra.mxu0 %v211
    %504 = vmatprep.subr.bf16.mxu0 0
    %505 = vmatpush1.bf16.msra.mxu0 %v210
    %506 = vmatprep.subr.bf16.mxu0 0
    %507 = vmatpush1.bf16.msra.mxu0 %v209
    %508 = vmatprep.subr.bf16.mxu0 0
    %509 = vmatpush1.bf16.msra.mxu0 %v208
    %510 = vmatprep.subr.bf16.mxu0 0
    %511 = vmatpush2.bf16.msra.mxu0 0
    %512 = vmatprep.subr.bf16.mxu0 0
    %513 = vmatpush2.bf16.msra.mxu0 0
    %514 = vmatprep.subr.bf16.mxu0 0
    %515 = vmatpush2.bf16.msra.mxu0 0
    %516 = vmatprep.subr.bf16.mxu0 0
    %517 = vmatpush2.bf16.msra.mxu0 0
    %518 = vmatprep.subr.bf16.mxu0 0
    %519 = vmatpush2.bf16.msra.mxu0 0
    %520 = vmatprep.subr.bf16.mxu0 0
    %521 = vmatpush2.bf16.msra.mxu0 0
    %522 = vmatprep.subr.bf16.mxu0 0
    %523 = vmatpush2.bf16.msra.mxu0 0
    %524 = vmatprep.subr.bf16.mxu0 0
    %525 = vmatpush2.bf16.msra.mxu0 0
    %526 = vmatprep.mubr.bf16.mxu0 0
    %527 = vmatmul.mubr.bf16.gmra.mxu0 %v493
    %v528 = vpop.f32.mrf.mxu0
    %v529 = vadd.f32 0.0, %v528
    %v530 = vpop.f32.mrf.mxu0
    %v531 = vpop.f32.mrf.mxu0
    %v532 = vpop.f32.mrf.mxu0
    %533 = vdwg.mxu0
    %v534 = vadd.f32 %v492, %v529
    %v535 = vtanh.pop %v534
    %s536 = scalar_lea.vmem [#allocation3], 56
    %v537 = vld [vmem:[%s536] sm:$0xff]
    %v538 = vpack.c.bf16 %v535, %v535
    %539 = vmatprep.subr.bf16.mxu0 0
    %540 = vmatpush1.bf16.msra.mxu0 %v215
    %541 = vmatprep.subr.bf16.mxu0 0
    %542 = vmatpush1.bf16.msra.mxu0 %v214
    %543 = vmatprep.subr.bf16.mxu0 0
    %544 = vmatpush1.bf16.msra.mxu0 %v213
    %545 = vmatprep.subr.bf16.mxu0 0
    %546 = vmatpush1.bf16.msra.mxu0 %v212
    %547 = vmatprep.subr.bf16.mxu0 0
    %548 = vmatpush1.bf16.msra.mxu0 %v211
    %549 = vmatprep.subr.bf16.mxu0 0
    %550 = vmatpush1.bf16.msra.mxu0 %v210
    %551 = vmatprep.subr.bf16.mxu0 0
    %552 = vmatpush1.bf16.msra.mxu0 %v209
    %553 = vmatprep.subr.bf16.mxu0 0
    %554 = vmatpush1.bf16.msra.mxu0 %v208
    %555 = vmatprep.subr.bf16.mxu0 0
    %556 = vmatpush2.bf16.msra.mxu0 0
    %557 = vmatprep.subr.bf16.mxu0 0
    %558 = vmatpush2.bf16.msra.mxu0 0
    %559 = vmatprep.subr.bf16.mxu0 0
    %560 = vmatpush2.bf16.msra.mxu0 0
    %561 = vmatprep.subr.bf16.mxu0 0
    %562 = vmatpush2.bf16.msra.mxu0 0
    %563 = vmatprep.subr.bf16.mxu0 0
    %564 = vmatpush2.bf16.msra.mxu0 0
    %565 = vmatprep.subr.bf16.mxu0 0
    %566 = vmatpush2.bf16.msra.mxu0 0
    %567 = vmatprep.subr.bf16.mxu0 0
    %568 = vmatpush2.bf16.msra.mxu0 0
    %569 = vmatprep.subr.bf16.mxu0 0
    %570 = vmatpush2.bf16.msra.mxu0 0
    %571 = vmatprep.mubr.bf16.mxu0 0
    %572 = vmatmul.mubr.bf16.gmra.mxu0 %v538
    %v573 = vpop.f32.mrf.mxu0
    %v574 = vadd.f32 0.0, %v573
    %v575 = vpop.f32.mrf.mxu0
    %v576 = vpop.f32.mrf.mxu0
    %v577 = vpop.f32.mrf.mxu0
    %578 = vdwg.mxu0
    %v579 = vadd.f32 %v537, %v574
    %v580 = vtanh.pop %v579
    %581 = vst [vmem:[#allocation2] sm:$0xff] %v580
    // Predicated region
    $region34: #{tpu_custom_call.1} parent=1 // pred_check
      %p582 = pneg %p39
    $region35: #{tpu_custom_call.1} parent=1 // pred_check_branch
      %584 = sbr.rel (%p582) target = $region37
    $region36: #{tpu_custom_call.1} parent=1 // pred_region
      %v585 = vld [vmem:[#allocation2] sm:$0xff]
      %v586 = vpack.c.bf16 %v585, %v585
      %v587 = vld [vmem:[#allocation4] sm:$0xf]
      %v588 = vld [vmem:[#allocation4 + $0x4] sm:$0xf]
      %v589 = vld [vmem:[#allocation4 + $0x8] sm:$0xf]
      %v590 = vld [vmem:[#allocation4 + $0xc] sm:$0xf]
      %v591 = vld [vmem:[#allocation4 + $0x10] sm:$0xf]
      %v592 = vld [vmem:[#allocation4 + $0x14] sm:$0xf]
      %v593 = vld [vmem:[#allocation4 + $0x18] sm:$0xf]
      %v594 = vld [vmem:[#allocation4 + $0x1c] sm:$0xf]
      %v595 = vld [vmem:[#allocation4 + $0x20] sm:$0xf]
      %v596 = vld [vmem:[#allocation4 + $0x24] sm:$0xf]
      %v597 = vld [vmem:[#allocation4 + $0x28] sm:$0xf]
      %v598 = vld [vmem:[#allocation4 + $0x2c] sm:$0xf]
      %v599 = vld [vmem:[#allocation4 + $0x30] sm:$0xf]
      %v600 = vld [vmem:[#allocation4 + $0x34] sm:$0xf]
      %v601 = vld [vmem:[#allocation4 + $0x38] sm:$0xf]
      %v602 = vld [vmem:[#allocation4 + $0x3c] sm:$0xf]
      %v603 = vld [vmem:[%s5] sm:$0x1]
      %v605 = vlaneseq
      %v606 = vshrl.u32 %v605, 7
      %v607 = vsub.s32 0, %v606
      %v608 = vrot.slane %v603, %v607
      %v626 = vunpack.c.l.b16 %v587
      %v627 = vunpack.c.l.b16 %v588
      %v628 = vunpack.c.l.b16 %v589
      %v629 = vunpack.c.l.b16 %v590
      %v630 = vunpack.c.l.b16 %v591
      %v631 = vunpack.c.l.b16 %v592
      %v632 = vunpack.c.l.b16 %v593
      %v633 = vunpack.c.l.b16 %v594
      %v634 = vunpack.c.l.b16 %v595
      %v635 = vunpack.c.l.b16 %v596
      %v636 = vunpack.c.l.b16 %v597
      %v637 = vunpack.c.l.b16 %v598
      %v638 = vunpack.c.l.b16 %v599
      %v639 = vunpack.c.l.b16 %v600
      %v640 = vunpack.c.l.b16 %v601
      %v641 = vunpack.c.l.b16 %v602
      %v642 = vpack.c.b16 %v627, %v626
      %v643 = vpack.c.b16 %v629, %v628
      %v644 = vpack.c.b16 %v631, %v630
      %v645 = vpack.c.b16 %v633, %v632
      %v646 = vpack.c.b16 %v635, %v634
      %v647 = vpack.c.b16 %v637, %v636
      %v648 = vpack.c.b16 %v639, %v638
      %v649 = vpack.c.b16 %v641, %v640
      %658 = vmatprep.subr.bf16.mxu0 0
      %659 = vmatpush1.bf16.msra.mxu0 %v649
      %660 = vmatprep.subr.bf16.mxu0 0
      %661 = vmatpush1.bf16.msra.mxu0 %v648
      %662 = vmatprep.subr.bf16.mxu0 0
      %663 = vmatpush1.bf16.msra.mxu0 %v647
      %664 = vmatprep.subr.bf16.mxu0 0
      %665 = vmatpush1.bf16.msra.mxu0 %v646
      %666 = vmatprep.subr.bf16.mxu0 0
      %667 = vmatpush1.bf16.msra.mxu0 %v645
      %668 = vmatprep.subr.bf16.mxu0 0
      %669 = vmatpush1.bf16.msra.mxu0 %v644
      %670 = vmatprep.subr.bf16.mxu0 0
      %671 = vmatpush1.bf16.msra.mxu0 %v643
      %672 = vmatprep.subr.bf16.mxu0 0
      %673 = vmatpush1.bf16.msra.mxu0 %v642
      %674 = vmatprep.subr.bf16.mxu0 0
      %675 = vmatpush2.bf16.msra.mxu0 0
      %676 = vmatprep.subr.bf16.mxu0 0
      %677 = vmatpush2.bf16.msra.mxu0 0
      %678 = vmatprep.subr.bf16.mxu0 0
      %679 = vmatpush2.bf16.msra.mxu0 0
      %680 = vmatprep.subr.bf16.mxu0 0
      %681 = vmatpush2.bf16.msra.mxu0 0
      %682 = vmatprep.subr.bf16.mxu0 0
      %683 = vmatpush2.bf16.msra.mxu0 0
      %684 = vmatprep.subr.bf16.mxu0 0
      %685 = vmatpush2.bf16.msra.mxu0 0
      %686 = vmatprep.subr.bf16.mxu0 0
      %687 = vmatpush2.bf16.msra.mxu0 0
      %688 = vmatprep.subr.bf16.mxu0 0
      %689 = vmatpush2.bf16.msra.mxu0 0
      %690 = vmatprep.mubr.bf16.mxu0 0
      %691 = vmatmul.mubr.bf16.gmra.mxu0 %v586
      %v692 = vpop.f32.mrf.mxu0
      %v693 = vadd.f32 %v608, %v692
      %v694 = vpop.f32.mrf.mxu0
      %v695 = vpop.f32.mrf.mxu0
      %v696 = vpop.f32.mrf.mxu0
      %697 = vdwg.mxu0
      %698 = vst [vmem:[#allocation7] sm:$0xff] %v693
    $region37: #{tpu_custom_call.1} parent=1 // pred_fallthru
      _
    // Predicated region
    $region38: #{tpu_custom_call.1} parent=1 // pred_check
      _
    $region39: #{tpu_custom_call.1} parent=1 // pred_check_branch
      %700 = sbr.rel (0) target = $region41
    $region40: #{tpu_custom_call.1} parent=1 // pred_region
      %s702 = ssub.s32 128, 128
      %703 = vsyncadd [#allocation6], %s702
      %s705 = sshll.u32 [#allocation7], 4
      %s706 = int_to_ptr.vmem [resolvable:$true] %s705
      %708 = dma.vmem_to_hbm [thread:$0]  %s706, 128, %s6, [#allocation6]
    $region41: #{tpu_custom_call.1} parent=1 // pred_fallthru
      _
    // Predicated region
    $region42: #{tpu_custom_call.1} parent=1 // pred_check
      _
    $region43: #{tpu_custom_call.1} parent=1 // pred_check_branch
      %710 = sbr.rel (0) target = $region45
    $region44: #{tpu_custom_call.1} parent=1 // pred_region
      %711 = dma.done [#allocation6], 128
    $region45: #{tpu_custom_call.1} parent=1 // pred_fallthru
      _
    %712 = vsyncpa [#allocation5], 1
    %713 = vsyncpa [#allocation6], 1

</llo_original>
